<compile_context>
chip_gen: v6e
topology: v6e:2x2x1
jax: 0.10.0
libtpu: 0.0.40
codegen_flags: <defaults>
</compile_context>

<pallas_src>
import functools

import numpy as np

import jax
import jax.numpy as jnp
from jax.experimental import pallas as pl
from jax.experimental.pallas import tpu as pltpu

LATENT_PAD = 64  # latent dim zero-padded to half a lane group; head output = 2*64 = 128 lanes


def _round_up(n, m):
    return ((n + m - 1) // m) * m


def _pick_tile_b(batch):
    """Batch tile: MXU-M aligned, keeps >=2 grid steps for megacore when batch is large."""
    if batch <= 512:
        # One grid step; round rows to the bf16 sublane pack (16).
        return _round_up(batch, 16)
    # Large batches: multiples of 256 (MXU height on v6e/v7x, 2x128 on v5e), with
    # at least 2 grid steps so ("parallel",) can use both TensorCores on v7x.
    # 1024-row tiles keep the double-buffered working set well inside 32 MiB VMEM
    # for MLP-sized layers.
    for tile in (1024, 512, 256):
        if (batch + tile - 1) // tile >= 2:
            return tile
    return 256


def _vae_kernel(
    x_ref, eps_ref,
    w1_ref, b1_ref, w2_ref, b2_ref,
    wh_ref, bh_ref,                                   # fused (means || log_var) head
    wd1_ref, bd1_ref, wd2_ref, bd2_ref, wd3_ref, bd3_ref,
    recon_ref, stats_ref,
):
    lp = LATENT_PAD

    # ---- Encoder fc_net: Linear -> ReLU -> Linear -> Identity ----
    x = x_ref[...]                                                        # bf16
    h = jnp.dot(x, w1_ref[...], preferred_element_type=jnp.float32) + b1_ref[...]
    h = jnp.maximum(h, 0.0)
    h = jnp.dot(h.astype(jnp.bfloat16), w2_ref[...],
                preferred_element_type=jnp.float32) + b2_ref[...]
    # NO activation after the second encoder linear (output_activation=Identity).

    # ---- Fused means / log_var head: one lane-dense 128-wide MXU matmul ----
    stats = jnp.dot(h.astype(jnp.bfloat16), wh_ref[...],
                    preferred_element_type=jnp.float32) + bh_ref[...]
    means_p = stats[:, :lp]                       # lanes 0:64  (zeros beyond true latent)
    # Realign log_var (lanes 64:128) to lane 0 with an XLU rotate (free slot).
    logvar_p = pltpu.roll(stats, shift=lp, axis=1)[:, :lp]

    # ---- reparametrize: z = eps * exp(0.5*log_var) + means  (f32 elementwise) ----
    std = jnp.exp(0.5 * logvar_p)
    z = eps_ref[...] * std + means_p              # padded lanes: 0*1 + 0 == 0 exactly

    # ---- Decoder deconv_net: Linear -> ReLU -> Linear -> ReLU -> Linear ----
    d = jnp.dot(z.astype(jnp.bfloat16), wd1_ref[...],
                preferred_element_type=jnp.float32) + bd1_ref[...]
    d = jnp.maximum(d, 0.0)
    d = jnp.dot(d.astype(jnp.bfloat16), wd2_ref[...],
                preferred_element_type=jnp.float32) + bd2_ref[...]
    d = jnp.maximum(d, 0.0)
    recon = jnp.dot(d.astype(jnp.bfloat16), wd3_ref[...],
                    preferred_element_type=jnp.float32) + bd3_ref[...]

    # recon kept f32 to preserve the module's output precision; could be emitted
    # bf16 (and upcast outside) for another ~17% HBM-byte cut if the loss tolerates.
    recon_ref[...] = recon
    stats_ref[...] = stats


def prepare_params(params):
    """One-time packing of the VAE weights for the fused kernel.

    Hoisted out of the jitted per-call path so the bf16 casts / pads / head
    fusion do not re-execute (and re-copy every weight in HBM) on every forward.
    """
    bf = jnp.bfloat16
    lp = LATENT_PAD
    latent = params["wm"].shape[1]
    assert latent <= lp, f"latent_size {latent} > LATENT_PAD {lp}"

    pad_c = lambda a: jnp.pad(a, ((0, 0), (0, lp - a.shape[1])))
    packed = {
        "w1": params["w1"].astype(bf), "b1": params["b1"].astype(jnp.float32),
        "w2": params["w2"].astype(bf), "b2": params["b2"].astype(jnp.float32),
        # Fused head: [means || log_var], each zero-padded to 64 lanes -> 128 wide.
        "wh": jnp.concatenate([pad_c(params["wm"]), pad_c(params["wv"])],
                              axis=1).astype(bf),
        "bh": jnp.concatenate([pad_c(params["bm"]), pad_c(params["bv"])],
                              axis=1).astype(jnp.float32),
        # Decoder first layer padded to the 64-lane padded latent (extra rows = 0).
        "wd1": jnp.pad(params["wd1"], ((0, lp - latent), (0, 0))).astype(bf),
        "bd1": params["bd1"].astype(jnp.float32),
        "wd2": params["wd2"].astype(bf), "bd2": params["bd2"].astype(jnp.float32),
        "wd3": params["wd3"].astype(bf), "bd3": params["bd3"].astype(jnp.float32),
    }
    return jax.tree_util.tree_map(jnp.asarray, packed)


@functools.partial(jax.jit, static_argnames=("input_dim",))
def vae_forward(x, eps, packed, *, input_dim):
    # Reproduce `x = x.view(-1, self.input_dim)` for the mlp branch.
    if x.ndim > 2:
        x = x.reshape(-1, input_dim)
    x = x.astype(jnp.bfloat16)            # matmul-input precision policy (f32 accumulate)

    batch = x.shape[0]
    latent = eps.shape[1]                  # true latent width (static)
    lp = LATENT_PAD
    hidden = packed["w1"].shape[1]
    output_dim = packed["wd3"].shape[1]

    # eps padded (lanes only) to the 64-lane padded latent; zeros in the pad lanes
    # keep the padded z lanes exactly zero.  TODO(synk): eps could be generated
    # in-kernel (pltpu.prng_seed + pltpu.stateful_normal) to remove this HBM read
    # entirely, at the cost of changing the RNG stream vs torch.randn.
    eps_p = jnp.pad(eps.astype(jnp.float32), ((0, 0), (0, lp - latent)))

    # Batch tiling: no host-side padding of x; partial last block is masked on
    # store (rows are independent).
    tile_b = _pick_tile_b(batch)
    grid = (pl.cdiv(batch, tile_b),)

    ordered = [x, eps_p,
               packed["w1"], packed["b1"], packed["w2"], packed["b2"],
               packed["wh"], packed["bh"],
               packed["wd1"], packed["bd1"], packed["wd2"], packed["bd2"],
               packed["wd3"], packed["bd3"]]

    def tile_spec(feat):
        return pl.BlockSpec((tile_b, feat), lambda i: (i, 0))

    def resident(arr):
        # Full-array block, constant index -> stays resident in VMEM across the grid.
        # (A single pipeline buffer via pipeline_mode=pl.Buffered(1) would save a
        # little VMEM; omitted to keep lowering maximally portable.)
        return pl.BlockSpec(arr.shape, lambda i: (0, 0))

    in_specs = [
        tile_spec(input_dim), tile_spec(lp),
        resident(packed["w1"]), resident(packed["b1"]),
        resident(packed["w2"]), resident(packed["b2"]),
        resident(packed["wh"]), resident(packed["bh"]),
        resident(packed["wd1"]), resident(packed["bd1"]),
        resident(packed["wd2"]), resident(packed["bd2"]),
        resident(packed["wd3"]), resident(packed["bd3"]),
    ]
    out_specs = (tile_spec(output_dim), tile_spec(2 * lp))
    out_shape = (
        jax.ShapeDtypeStruct((batch, output_dim), jnp.float32),   # recon_x
        jax.ShapeDtypeStruct((batch, 2 * lp), jnp.float32),       # means || log_var
    )

    # Advisory cost estimate so XLA schedules the custom call sensibly.
    mm_elems = (input_dim * hidden + hidden * hidden + hidden * 2 * lp
                + lp * hidden + hidden * hidden + hidden * output_dim)
    flops = 2 * batch * mm_elems
    bytes_accessed = (batch * input_dim * 2 + batch * lp * 4                 # x, eps
                      + mm_elems * 2                                         # bf16 weights
                      + 4 * (4 * hidden + 2 * lp + output_dim)               # biases
                      + batch * output_dim * 4 + batch * 2 * lp * 4)         # outputs
    cost = pl.CostEstimate(flops=flops, transcendentals=batch * lp,
                           bytes_accessed=bytes_accessed)

    recon_x, stats = pl.pallas_call(
        _vae_kernel,
        out_shape=out_shape,
        grid=grid,
        in_specs=in_specs,
        out_specs=out_specs,
        compiler_params=pltpu.CompilerParams(
            dimension_semantics=("parallel",),      # shard batch grid across TCs (v7x)
            vmem_limit_bytes=32 * 1024 * 1024,      # explicit: v5e default is only 16 MiB
        ),
        cost_estimate=cost,
    )(*ordered)

    means = stats[:, :latent]
    log_var = stats[:, lp:lp + latent]
    return recon_x, means, log_var


def vae_reference(x, eps, params, *, input_dim):
    """Pure-JAX reference with the same bf16-input / f32-accumulate matmul policy."""
    if x.ndim > 2:
        x = x.reshape(-1, input_dim)
    x = x.astype(jnp.float32)
    bf = jnp.bfloat16

    def lin(a, w, b):
        return jnp.dot(a.astype(bf), w.astype(bf),
                       preferred_element_type=jnp.float32) + b

    h = jnp.maximum(lin(x, params["w1"], params["b1"]), 0.0)
    h = lin(h, params["w2"], params["b2"])
    means = lin(h, params["wm"], params["bm"])
    log_var = lin(h, params["wv"], params["bv"])
    z = eps * jnp.exp(0.5 * log_var) + means
    d = jnp.maximum(lin(z, params["wd1"], params["bd1"]), 0.0)
    d = jnp.maximum(lin(d, params["wd2"], params["bd2"]), 0.0)
    recon = lin(d, params["wd3"], params["bd3"])
    return recon, means, log_var


def init_params(key, input_dim, hidden, latent, output_dim):
    """Deterministic synthetic parameters (PyTorch-default-like uniform init)."""
    def linear(k, fan_in, fan_out):
        k_w, k_b = jax.random.split(k)
        bound = 1.0 / jnp.sqrt(fan_in)
        w = jax.random.uniform(k_w, (fan_in, fan_out), jnp.float32, -bound, bound)
        b = jax.random.uniform(k_b, (1, fan_out), jnp.float32, -bound, bound)
        return w, b

    keys = jax.random.split(key, 7)
    p = {}
    # Encoder fc_net: [input_dim, hidden, hidden]
    p["w1"], p["b1"] = linear(keys[0], input_dim, hidden)
    p["w2"], p["b2"] = linear(keys[1], hidden, hidden)
    # Heads
    p["wm"], p["bm"] = linear(keys[2], hidden, latent)
    p["wv"], p["bv"] = linear(keys[3], hidden, latent)
    # Decoder deconv_net: [latent, hidden, hidden, output_dim]
    p["wd1"], p["bd1"] = linear(keys[4], latent, hidden)
    p["wd2"], p["bd2"] = linear(keys[5], hidden, hidden)
    p["wd3"], p["bd3"] = linear(keys[6], hidden, output_dim)
    return p


if __name__ == "__main__":
    # Small MLP-consistent shapes: batch=16, 16x16 image flattened to input_dim=256,
    # hidden=256, latent=8, output_dim = input_dim (vanilla reconstruction VAE).
    B, C, H, W = 16, 1, 16, 16
    INPUT_DIM = C * H * W      # 256
    HIDDEN = 256
    LATENT = 8
    OUTPUT_DIM = INPUT_DIM

    key = jax.random.PRNGKey(0)
    k_x, k_eps, k_p = jax.random.split(key, 3)

    x = jax.random.normal(k_x, (B, C, H, W), jnp.float32)
    # eps corresponds to torch.randn in reparametrize(); generated with jax.random
    # (not torch's RNG stream) and passed in so the kernel is reproducible/testable.
    eps = jax.random.normal(k_eps, (B, LATENT), jnp.float32)

    params = init_params(k_p, INPUT_DIM, HIDDEN, LATENT, OUTPUT_DIM)
    packed = prepare_params(params)   # one-time weight packing (outside the jitted path)

    recon_x, means, log_var = vae_forward(x, eps, packed, input_dim=INPUT_DIM)
    jax.block_until_ready((recon_x, means, log_var))

    assert recon_x.shape == (B, OUTPUT_DIM)
    assert means.shape == (B, LATENT)
    assert log_var.shape == (B, LATENT)

    # Numerical check against a plain-JAX reference with the same precision policy.
    ref = vae_reference(x, eps, params, input_dim=INPUT_DIM)
    for got, want in zip((recon_x, means, log_var), ref):
        np.testing.assert_allclose(np.asarray(got), np.asarray(want),
                                   atol=2e-2, rtol=2e-2)

    print("KERNEL_OK")
</pallas_src>

<mosaic_0001>
module attributes {stable_mosaic.version = 11 : i64} {
  func.func @_vae_kernel(%arg0: i32, %arg1: memref<16x256xbf16, #tpu.memory_space<vmem>>, %arg2: memref<16x64xf32, #tpu.memory_space<vmem>>, %arg3: memref<256x256xbf16, #tpu.memory_space<vmem>>, %arg4: memref<1x256xf32, #tpu.memory_space<vmem>>, %arg5: memref<256x256xbf16, #tpu.memory_space<vmem>>, %arg6: memref<1x256xf32, #tpu.memory_space<vmem>>, %arg7: memref<256x128xbf16, #tpu.memory_space<vmem>>, %arg8: memref<1x128xf32, #tpu.memory_space<vmem>>, %arg9: memref<64x256xbf16, #tpu.memory_space<vmem>>, %arg10: memref<1x256xf32, #tpu.memory_space<vmem>>, %arg11: memref<256x256xbf16, #tpu.memory_space<vmem>>, %arg12: memref<1x256xf32, #tpu.memory_space<vmem>>, %arg13: memref<256x256xbf16, #tpu.memory_space<vmem>>, %arg14: memref<1x256xf32, #tpu.memory_space<vmem>>, %arg15: memref<16x256xf32, #tpu.memory_space<vmem>>, %arg16: memref<16x128xf32, #tpu.memory_space<vmem>>) attributes {dimension_semantics = [#tpu.dimension_semantics<parallel>], iteration_bounds = array<i64: 1>, scalar_prefetch = 0 : i64, scratch_operands = 0 : i64, tpu.core_type = #tpu.core_type<tc>, window_params = [{transform_indices = @transform_0, window_bounds = array<i64: 16, 256>}, {transform_indices = @transform_1, window_bounds = array<i64: 16, 64>}, {pipeline_mode = #tpu.pipeline_mode<synchronous>, transform_indices = @transform_2, window_bounds = array<i64: 256, 256>}, {pipeline_mode = #tpu.pipeline_mode<synchronous>, transform_indices = @transform_3, window_bounds = array<i64: 1, 256>}, {pipeline_mode = #tpu.pipeline_mode<synchronous>, transform_indices = @transform_4, window_bounds = array<i64: 256, 256>}, {pipeline_mode = #tpu.pipeline_mode<synchronous>, transform_indices = @transform_5, window_bounds = array<i64: 1, 256>}, {pipeline_mode = #tpu.pipeline_mode<synchronous>, transform_indices = @transform_6, window_bounds = array<i64: 256, 128>}, {pipeline_mode = #tpu.pipeline_mode<synchronous>, transform_indices = @transform_7, window_bounds = array<i64: 1, 128>}, {pipeline_mode = #tpu.pipeline_mode<synchronous>, transform_indices = @transform_8, window_bounds = array<i64: 64, 256>}, {pipeline_mode = #tpu.pipeline_mode<synchronous>, transform_indices = @transform_9, window_bounds = array<i64: 1, 256>}, {pipeline_mode = #tpu.pipeline_mode<synchronous>, transform_indices = @transform_10, window_bounds = array<i64: 256, 256>}, {pipeline_mode = #tpu.pipeline_mode<synchronous>, transform_indices = @transform_11, window_bounds = array<i64: 1, 256>}, {pipeline_mode = #tpu.pipeline_mode<synchronous>, transform_indices = @transform_12, window_bounds = array<i64: 256, 256>}, {pipeline_mode = #tpu.pipeline_mode<synchronous>, transform_indices = @transform_13, window_bounds = array<i64: 1, 256>}, {transform_indices = @transform_14, window_bounds = array<i64: 16, 256>}, {transform_indices = @transform_15, window_bounds = array<i64: 16, 128>}]} {
    %c0 = arith.constant 0 : index
    %c0_0 = arith.constant 0 : index
    %0 = vector.load %arg1[%c0, %c0_0] : memref<16x256xbf16, #tpu.memory_space<vmem>>, vector<16x256xbf16>
    %c0_1 = arith.constant 0 : index
    %c0_2 = arith.constant 0 : index
    %1 = vector.load %arg3[%c0_1, %c0_2] : memref<256x256xbf16, #tpu.memory_space<vmem>>, vector<256x256xbf16>
    %cst = arith.constant dense<0.000000e+00> : vector<16x256xf32>
    %2 = tpu.matmul %0, %1, %cst {dimension_numbers = #tpu.dot_dimension_numbers<[1], [0], [0], [1], [0, 0, 1, 1], [], []>} : vector<16x256xbf16>, vector<256x256xbf16>, vector<16x256xf32> -> vector<16x256xf32>
    %c0_3 = arith.constant 0 : index
    %c0_4 = arith.constant 0 : index
    %3 = vector.load %arg4[%c0_3, %c0_4] : memref<1x256xf32, #tpu.memory_space<vmem>>, vector<1x256xf32>
    %4 = vector.broadcast %3 : vector<1x256xf32> to vector<16x256xf32>
    %5 = arith.addf %2, %4 : vector<16x256xf32>
    %cst_5 = arith.constant 0.000000e+00 : f32
    %6 = vector.broadcast %cst_5 : f32 to vector<16x256xf32>
    %7 = arith.maximumf %5, %6 : vector<16x256xf32>
    %8 = arith.truncf %7 : vector<16x256xf32> to vector<16x256xbf16>
    %c0_6 = arith.constant 0 : index
    %c0_7 = arith.constant 0 : index
    %9 = vector.load %arg5[%c0_6, %c0_7] : memref<256x256xbf16, #tpu.memory_space<vmem>>, vector<256x256xbf16>
    %cst_8 = arith.constant dense<0.000000e+00> : vector<16x256xf32>
    %10 = tpu.matmul %8, %9, %cst_8 {dimension_numbers = #tpu.dot_dimension_numbers<[1], [0], [0], [1], [0, 0, 1, 1], [], []>} : vector<16x256xbf16>, vector<256x256xbf16>, vector<16x256xf32> -> vector<16x256xf32>
    %c0_9 = arith.constant 0 : index
    %c0_10 = arith.constant 0 : index
    %11 = vector.load %arg6[%c0_9, %c0_10] : memref<1x256xf32, #tpu.memory_space<vmem>>, vector<1x256xf32>
    %12 = vector.broadcast %11 : vector<1x256xf32> to vector<16x256xf32>
    %13 = arith.addf %10, %12 : vector<16x256xf32>
    %14 = arith.truncf %13 : vector<16x256xf32> to vector<16x256xbf16>
    %c0_11 = arith.constant 0 : index
    %c0_12 = arith.constant 0 : index
    %15 = vector.load %arg7[%c0_11, %c0_12] : memref<256x128xbf16, #tpu.memory_space<vmem>>, vector<256x128xbf16>
    %cst_13 = arith.constant dense<0.000000e+00> : vector<16x128xf32>
    %16 = tpu.matmul %14, %15, %cst_13 {dimension_numbers = #tpu.dot_dimension_numbers<[1], [0], [0], [1], [0, 0, 1, 1], [], []>} : vector<16x256xbf16>, vector<256x128xbf16>, vector<16x128xf32> -> vector<16x128xf32>
    %c0_14 = arith.constant 0 : index
    %c0_15 = arith.constant 0 : index
    %17 = vector.load %arg8[%c0_14, %c0_15] : memref<1x128xf32, #tpu.memory_space<vmem>>, vector<1x128xf32>
    %18 = vector.broadcast %17 : vector<1x128xf32> to vector<16x128xf32>
    %19 = arith.addf %16, %18 : vector<16x128xf32>
    %20 = vector.extract_strided_slice %19 {offsets = [0, 0], sizes = [16, 64], strides = [1, 1]} : vector<16x128xf32> to vector<16x64xf32>
    %c64_i32 = arith.constant 64 : i32
    %21 = tpu.dynamic_rotate %19 by %c64_i32 dim 1 : vector<16x128xf32>, i32 -> vector<16x128xf32>
    %22 = vector.extract_strided_slice %21 {offsets = [0, 0], sizes = [16, 64], strides = [1, 1]} : vector<16x128xf32> to vector<16x64xf32>
    %cst_16 = arith.constant 5.000000e-01 : f32
    %23 = vector.broadcast %cst_16 : f32 to vector<16x64xf32>
    %24 = arith.mulf %23, %22 : vector<16x64xf32>
    %25 = math.exp %24 : vector<16x64xf32>
    %c0_17 = arith.constant 0 : index
    %c0_18 = arith.constant 0 : index
    %26 = vector.load %arg2[%c0_17, %c0_18] : memref<16x64xf32, #tpu.memory_space<vmem>>, vector<16x64xf32>
    %27 = arith.mulf %26, %25 : vector<16x64xf32>
    %28 = arith.addf %27, %20 : vector<16x64xf32>
    %29 = arith.truncf %28 : vector<16x64xf32> to vector<16x64xbf16>
    %c0_19 = arith.constant 0 : index
    %c0_20 = arith.constant 0 : index
    %30 = vector.load %arg9[%c0_19, %c0_20] : memref<64x256xbf16, #tpu.memory_space<vmem>>, vector<64x256xbf16>
    %cst_21 = arith.constant dense<0.000000e+00> : vector<16x256xf32>
    %31 = tpu.matmul %29, %30, %cst_21 {dimension_numbers = #tpu.dot_dimension_numbers<[1], [0], [0], [1], [0, 0, 1, 1], [], []>} : vector<16x64xbf16>, vector<64x256xbf16>, vector<16x256xf32> -> vector<16x256xf32>
    %c0_22 = arith.constant 0 : index
    %c0_23 = arith.constant 0 : index
    %32 = vector.load %arg10[%c0_22, %c0_23] : memref<1x256xf32, #tpu.memory_space<vmem>>, vector<1x256xf32>
    %33 = vector.broadcast %32 : vector<1x256xf32> to vector<16x256xf32>
    %34 = arith.addf %31, %33 : vector<16x256xf32>
    %cst_24 = arith.constant 0.000000e+00 : f32
    %35 = vector.broadcast %cst_24 : f32 to vector<16x256xf32>
    %36 = arith.maximumf %34, %35 : vector<16x256xf32>
    %37 = arith.truncf %36 : vector<16x256xf32> to vector<16x256xbf16>
    %c0_25 = arith.constant 0 : index
    %c0_26 = arith.constant 0 : index
    %38 = vector.load %arg11[%c0_25, %c0_26] : memref<256x256xbf16, #tpu.memory_space<vmem>>, vector<256x256xbf16>
    %cst_27 = arith.constant dense<0.000000e+00> : vector<16x256xf32>
    %39 = tpu.matmul %37, %38, %cst_27 {dimension_numbers = #tpu.dot_dimension_numbers<[1], [0], [0], [1], [0, 0, 1, 1], [], []>} : vector<16x256xbf16>, vector<256x256xbf16>, vector<16x256xf32> -> vector<16x256xf32>
    %c0_28 = arith.constant 0 : index
    %c0_29 = arith.constant 0 : index
    %40 = vector.load %arg12[%c0_28, %c0_29] : memref<1x256xf32, #tpu.memory_space<vmem>>, vector<1x256xf32>
    %41 = vector.broadcast %40 : vector<1x256xf32> to vector<16x256xf32>
    %42 = arith.addf %39, %41 : vector<16x256xf32>
    %cst_30 = arith.constant 0.000000e+00 : f32
    %43 = vector.broadcast %cst_30 : f32 to vector<16x256xf32>
    %44 = arith.maximumf %42, %43 : vector<16x256xf32>
    %45 = arith.truncf %44 : vector<16x256xf32> to vector<16x256xbf16>
    %c0_31 = arith.constant 0 : index
    %c0_32 = arith.constant 0 : index
    %46 = vector.load %arg13[%c0_31, %c0_32] : memref<256x256xbf16, #tpu.memory_space<vmem>>, vector<256x256xbf16>
    %cst_33 = arith.constant dense<0.000000e+00> : vector<16x256xf32>
    %47 = tpu.matmul %45, %46, %cst_33 {dimension_numbers = #tpu.dot_dimension_numbers<[1], [0], [0], [1], [0, 0, 1, 1], [], []>} : vector<16x256xbf16>, vector<256x256xbf16>, vector<16x256xf32> -> vector<16x256xf32>
    %c0_34 = arith.constant 0 : index
    %c0_35 = arith.constant 0 : index
    %48 = vector.load %arg14[%c0_34, %c0_35] : memref<1x256xf32, #tpu.memory_space<vmem>>, vector<1x256xf32>
    %49 = vector.broadcast %48 : vector<1x256xf32> to vector<16x256xf32>
    %50 = arith.addf %47, %49 : vector<16x256xf32>
    %c0_36 = arith.constant 0 : index
    %c0_37 = arith.constant 0 : index
    %51 = vector.load %arg15[%c0_36, %c0_37] : memref<16x256xf32, #tpu.memory_space<vmem>>, vector<16x256xf32>
    tpu.vector_store %arg15[%c0_36, %c0_37], %50 {strides = array<i32>} : memref<16x256xf32, #tpu.memory_space<vmem>>, vector<16x256xf32>,
    %c0_38 = arith.constant 0 : index
    %c0_39 = arith.constant 0 : index
    %52 = vector.load %arg16[%c0_38, %c0_39] : memref<16x128xf32, #tpu.memory_space<vmem>>, vector<16x128xf32>
    tpu.vector_store %arg16[%c0_38, %c0_39], %19 {strides = array<i32>} : memref<16x128xf32, #tpu.memory_space<vmem>>, vector<16x128xf32>,
    return
  }
  func.func @transform_0(%arg0: i32) -> (i32, i32) {
    %c0_i32 = arith.constant 0 : i32
    %c0_i32_0 = arith.constant 0 : i32
    return %arg0, %c0_i32 : i32, i32
  }
  func.func @transform_1(%arg0: i32) -> (i32, i32) {
    %c0_i32 = arith.constant 0 : i32
    %c0_i32_0 = arith.constant 0 : i32
    return %arg0, %c0_i32 : i32, i32
  }
  func.func @transform_2(%arg0: i32) -> (i32, i32) {
    %c0_i32 = arith.constant 0 : i32
    %c0_i32_0 = arith.constant 0 : i32
    %c0_i32_1 = arith.constant 0 : i32
    return %c0_i32, %c0_i32_0 : i32, i32
  }
  func.func @transform_3(%arg0: i32) -> (i32, i32) {
    %c0_i32 = arith.constant 0 : i32
    %c0_i32_0 = arith.constant 0 : i32
    %c0_i32_1 = arith.constant 0 : i32
    return %c0_i32, %c0_i32_0 : i32, i32
  }
  func.func @transform_4(%arg0: i32) -> (i32, i32) {
    %c0_i32 = arith.constant 0 : i32
    %c0_i32_0 = arith.constant 0 : i32
    %c0_i32_1 = arith.constant 0 : i32
    return %c0_i32, %c0_i32_0 : i32, i32
  }
  func.func @transform_5(%arg0: i32) -> (i32, i32) {
    %c0_i32 = arith.constant 0 : i32
    %c0_i32_0 = arith.constant 0 : i32
    %c0_i32_1 = arith.constant 0 : i32
    return %c0_i32, %c0_i32_0 : i32, i32
  }
  func.func @transform_6(%arg0: i32) -> (i32, i32) {
    %c0_i32 = arith.constant 0 : i32
    %c0_i32_0 = arith.constant 0 : i32
    %c0_i32_1 = arith.constant 0 : i32
    return %c0_i32, %c0_i32_0 : i32, i32
  }
  func.func @transform_7(%arg0: i32) -> (i32, i32) {
    %c0_i32 = arith.constant 0 : i32
    %c0_i32_0 = arith.constant 0 : i32
    %c0_i32_1 = arith.constant 0 : i32
    return %c0_i32, %c0_i32_0 : i32, i32
  }
  func.func @transform_8(%arg0: i32) -> (i32, i32) {
    %c0_i32 = arith.constant 0 : i32
    %c0_i32_0 = arith.constant 0 : i32
    %c0_i32_1 = arith.constant 0 : i32
    return %c0_i32, %c0_i32_0 : i32, i32
  }
  func.func @transform_9(%arg0: i32) -> (i32, i32) {
    %c0_i32 = arith.constant 0 : i32
    %c0_i32_0 = arith.constant 0 : i32
    %c0_i32_1 = arith.constant 0 : i32
    return %c0_i32, %c0_i32_0 : i32, i32
  }
  func.func @transform_10(%arg0: i32) -> (i32, i32) {
    %c0_i32 = arith.constant 0 : i32
    %c0_i32_0 = arith.constant 0 : i32
    %c0_i32_1 = arith.constant 0 : i32
    return %c0_i32, %c0_i32_0 : i32, i32
  }
  func.func @transform_11(%arg0: i32) -> (i32, i32) {
    %c0_i32 = arith.constant 0 : i32
    %c0_i32_0 = arith.constant 0 : i32
    %c0_i32_1 = arith.constant 0 : i32
    return %c0_i32, %c0_i32_0 : i32, i32
  }
  func.func @transform_12(%arg0: i32) -> (i32, i32) {
    %c0_i32 = arith.constant 0 : i32
    %c0_i32_0 = arith.constant 0 : i32
    %c0_i32_1 = arith.constant 0 : i32
    return %c0_i32, %c0_i32_0 : i32, i32
  }
  func.func @transform_13(%arg0: i32) -> (i32, i32) {
    %c0_i32 = arith.constant 0 : i32
    %c0_i32_0 = arith.constant 0 : i32
    %c0_i32_1 = arith.constant 0 : i32
    return %c0_i32, %c0_i32_0 : i32, i32
  }
  func.func @transform_14(%arg0: i32) -> (i32, i32) {
    %c0_i32 = arith.constant 0 : i32
    %c0_i32_0 = arith.constant 0 : i32
    return %arg0, %c0_i32 : i32, i32
  }
  func.func @transform_15(%arg0: i32) -> (i32, i32) {
    %c0_i32 = arith.constant 0 : i32
    %c0_i32_0 = arith.constant 0 : i32
    return %arg0, %c0_i32 : i32, i32
  }
}

</mosaic_0001>

<llo_original>
// kernel: vae_forward.1
$region0: #{vae_forward.1}
  #allocation0 [shape = 'u32[]', space=smem, size = 0x4, offset = 0x4, fixed_abs, tag = 'smem constant byte address 0x4 - core index']
  #allocation1 [shape = 'u32[144,128]{1,0:T(1,128)}', space=vmem, size = 0x12000, scoped, tag = 'internal scratch']
  %s0 = inlined_call_operand.vmem [shape: bf16[16,256], index: 0, kind: input, shape index: {}]
  %s1 = inlined_call_operand.vmem [shape: f32[16,64], index: 1, kind: input, shape index: {}]
  %s2 = inlined_call_operand.vmem [shape: bf16[256,256], index: 2, kind: input, shape index: {}]
  %s3 = inlined_call_operand.vmem [shape: f32[1,256], index: 3, kind: input, shape index: {}]
  %s4 = inlined_call_operand.vmem [shape: bf16[256,256], index: 4, kind: input, shape index: {}]
  %s5 = inlined_call_operand.vmem [shape: f32[1,256], index: 5, kind: input, shape index: {}]
  %s6 = inlined_call_operand.hbm [shape: bf16[256,128], index: 6, kind: input, shape index: {}]
  %s7 = inlined_call_operand.hbm [shape: f32[1,128], index: 7, kind: input, shape index: {}]
  %s8 = inlined_call_operand.vmem [shape: bf16[64,256], index: 8, kind: input, shape index: {}]
  %s9 = inlined_call_operand.vmem [shape: f32[1,256], index: 9, kind: input, shape index: {}]
  %s10 = inlined_call_operand.hbm [shape: bf16[256,256], index: 10, kind: input, shape index: {}]
  %s11 = inlined_call_operand.vmem [shape: f32[1,256], index: 11, kind: input, shape index: {}]
  %s12 = inlined_call_operand.hbm [shape: bf16[256,256], index: 12, kind: input, shape index: {}]
  %s13 = inlined_call_operand.hbm [shape: f32[1,256], index: 13, kind: input, shape index: {}]
  %s14 = inlined_call_operand.hbm [shape: f32[16,256], index: 14, kind: output, shape index: {0}]
  %s15 = inlined_call_operand.vmem [shape: f32[16,128], index: 15, kind: output, shape index: {1}]
  %16 = xla_tuple %s14, %s15
  %s17 = sld [smem:[#allocation0]]
  $region94: #{vae_forward.1} parent=0
    _
  %s19 = ssub.s32 1, %s17
  %s20 = scalar_select 0, %s19, %s17
  $region1: #{vae_forward.1} parent=0
    #allocation2 [shape = 'u8[65536]{0}', space=vmem, size = 0x10000, scoped, tag = 'input window, operand 6, single buffered']
    #allocation3 [shape = 's32[1]{0}', space=sflag, size = 0x4, scoped, tag = 'scoped memory for vae_forward.1']
    #allocation4 [shape = 's32[1]{0}', space=sflag, size = 0x4, scoped, tag = 'scoped memory for vae_forward.1']
    #allocation5 [shape = 'u8[512]{0}', space=vmem, size = 0x400, scoped, tag = 'input window, operand 7, single buffered']
    #allocation6 [shape = 's32[1]{0}', space=sflag, size = 0x4, scoped, tag = 'scoped memory for vae_forward.1']
    #allocation7 [shape = 'u8[131072]{0}', space=vmem, size = 0x20000, scoped, tag = 'input window, operand 10, single buffered']
    #allocation8 [shape = 'u8[131072]{0}', space=vmem, size = 0x20000, scoped, tag = 'input window, operand 12, single buffered']
    #allocation9 [shape = 's32[1]{0}', space=sflag, size = 0x4, scoped, tag = 'scoped memory for vae_forward.1']
    #allocation10 [shape = 'u8[1024]{0}', space=vmem, size = 0x400, scoped, tag = 'input window, operand 13, single buffered']
    #allocation11 [shape = 'u8[16384]{0}', space=vmem, size = 0x4000, scoped, tag = 'output window, operand 0, single buffered']
    %21 = vsyncpa [#allocation3], 0
    %22 = vsyncpa [#allocation6], 0
    %23 = vsyncpa [#allocation9], 0
    %24 = vsyncpa [#allocation4], 0
    // Predicated region
    $region2: #{vae_forward.1} parent=1 // pred_check
      _
    $region3: #{vae_forward.1} parent=1 // pred_check_branch
      %26 = sbr.rel (0) target = $region5
    $region4: #{vae_forward.1} parent=1 // pred_region
      _
    $region5: #{vae_forward.1} parent=1 // pred_fallthru
      _
    // Predicated region
    $region6: #{vae_forward.1} parent=1 // pred_check
      _
    $region7: #{vae_forward.1} parent=1 // pred_check_branch
      %28 = sbr.rel (0) target = $region9
    $region8: #{vae_forward.1} parent=1 // pred_region
      _
    $region9: #{vae_forward.1} parent=1 // pred_fallthru
      _
    // Predicated region
    $region10: #{vae_forward.1} parent=1 // pred_check
      _
    $region11: #{vae_forward.1} parent=1 // pred_check_branch
      %30 = sbr.rel (0) target = $region13
    $region12: #{vae_forward.1} parent=1 // pred_region
      _
    $region13: #{vae_forward.1} parent=1 // pred_fallthru
      _
    // Predicated region
    $region14: #{vae_forward.1} parent=1 // pred_check
      _
    $region15: #{vae_forward.1} parent=1 // pred_check_branch
      %32 = sbr.rel (0) target = $region17
    $region16: #{vae_forward.1} parent=1 // pred_region
      _
    $region17: #{vae_forward.1} parent=1 // pred_fallthru
      _
    // Predicated region
    $region18: #{vae_forward.1} parent=1 // pred_check
      _
    $region19: #{vae_forward.1} parent=1 // pred_check_branch
      %34 = sbr.rel (0) target = $region21
    $region20: #{vae_forward.1} parent=1 // pred_region
      _
    $region21: #{vae_forward.1} parent=1 // pred_fallthru
      _
    // Predicated region
    $region22: #{vae_forward.1} parent=1 // pred_check
      _
    $region23: #{vae_forward.1} parent=1 // pred_check_branch
      %36 = sbr.rel (0) target = $region25
    $region24: #{vae_forward.1} parent=1 // pred_region
      _
    $region25: #{vae_forward.1} parent=1 // pred_fallthru
      _
    // Predicated region
    $region26: #{vae_forward.1} parent=1 // pred_check
      _
    $region27: #{vae_forward.1} parent=1 // pred_check_branch
      %38 = sbr.rel (0) target = $region29
    $region28: #{vae_forward.1} parent=1 // pred_region
      %s40 = ssub.s32 2048, 2048
      %41 = vsyncadd [#allocation3], %s40
      %s42 = sshll.u32 [#allocation2], 4
      %s43 = int_to_ptr.vmem [resolvable:$true] %s42
      %48 = dma.hbm_to_vmem [thread:$0]  %s6, 2048, %s43, [#allocation3], 64, 64, 4
    $region29: #{vae_forward.1} parent=1 // pred_fallthru
      _
    // Predicated region
    $region30: #{vae_forward.1} parent=1 // pred_check
      _
    $region31: #{vae_forward.1} parent=1 // pred_check_branch
      %50 = sbr.rel (0) target = $region33
    $region32: #{vae_forward.1} parent=1 // pred_region
      %s52 = ssub.s32 16, 16
      %53 = vsyncadd [#allocation6], %s52
      %s55 = sshll.u32 [#allocation5], 4
      %s56 = int_to_ptr.vmem [resolvable:$true] %s55
      %58 = dma.hbm_to_vmem [thread:$0]  %s7, 16, %s56, [#allocation6]
    $region33: #{vae_forward.1} parent=1 // pred_fallthru
      _
    // Predicated region
    $region34: #{vae_forward.1} parent=1 // pred_check
      _
    $region35: #{vae_forward.1} parent=1 // pred_check_branch
      %60 = sbr.rel (0) target = $region37
    $region36: #{vae_forward.1} parent=1 // pred_region
      _
    $region37: #{vae_forward.1} parent=1 // pred_fallthru
      _
    // Predicated region
    $region38: #{vae_forward.1} parent=1 // pred_check
      _
    $region39: #{vae_forward.1} parent=1 // pred_check_branch
      %62 = sbr.rel (0) target = $region41
    $region40: #{vae_forward.1} parent=1 // pred_region
      _
    $region41: #{vae_forward.1} parent=1 // pred_fallthru
      _
    // Predicated region
    $region42: #{vae_forward.1} parent=1 // pred_check
      _
    $region43: #{vae_forward.1} parent=1 // pred_check_branch
      %64 = sbr.rel (0) target = $region45
    $region44: #{vae_forward.1} parent=1 // pred_region
      %s66 = ssub.s32 4096, 4096
      %67 = vsyncadd [#allocation6], %s66
      %s68 = sshll.u32 [#allocation7], 4
      %s69 = int_to_ptr.vmem [resolvable:$true] %s68
      %74 = dma.hbm_to_vmem [thread:$0]  %s10, 4096, %s69, [#allocation6], 128, 128, 8
    $region45: #{vae_forward.1} parent=1 // pred_fallthru
      _
    // Predicated region
    $region46: #{vae_forward.1} parent=1 // pred_check
      _
    $region47: #{vae_forward.1} parent=1 // pred_check_branch
      %76 = sbr.rel (0) target = $region49
    $region48: #{vae_forward.1} parent=1 // pred_region
      _
    $region49: #{vae_forward.1} parent=1 // pred_fallthru
      _
    // Predicated region
    $region50: #{vae_forward.1} parent=1 // pred_check
      _
    $region51: #{vae_forward.1} parent=1 // pred_check_branch
      %78 = sbr.rel (0) target = $region53
    $region52: #{vae_forward.1} parent=1 // pred_region
      %s80 = ssub.s32 4096, 4096
      %81 = vsyncadd [#allocation9], %s80
      %s82 = sshll.u32 [#allocation8], 4
      %s83 = int_to_ptr.vmem [resolvable:$true] %s82
      %88 = dma.hbm_to_vmem [thread:$0]  %s12, 4096, %s83, [#allocation9], 128, 128, 8
    $region53: #{vae_forward.1} parent=1 // pred_fallthru
      _
    // Predicated region
    $region54: #{vae_forward.1} parent=1 // pred_check
      _
    $region55: #{vae_forward.1} parent=1 // pred_check_branch
      %90 = sbr.rel (0) target = $region57
    $region56: #{vae_forward.1} parent=1 // pred_region
      %s92 = ssub.s32 32, 32
      %93 = vsyncadd [#allocation9], %s92
      %s95 = sshll.u32 [#allocation10], 4
      %s96 = int_to_ptr.vmem [resolvable:$true] %s95
      %98 = dma.hbm_to_vmem [thread:$0]  %s13, 32, %s96, [#allocation9]
    $region57: #{vae_forward.1} parent=1 // pred_fallthru
      _
    // Predicated region
    $region58: #{vae_forward.1} parent=1 // pred_check
      _
    $region59: #{vae_forward.1} parent=1 // pred_check_branch
      %100 = sbr.rel (0) target = $region61
    $region60: #{vae_forward.1} parent=1 // pred_region
      %101 = dma.done [#allocation3], 2048
    $region61: #{vae_forward.1} parent=1 // pred_fallthru
      _
    // Predicated region
    $region62: #{vae_forward.1} parent=1 // pred_check
      _
    $region63: #{vae_forward.1} parent=1 // pred_check_branch
      %103 = sbr.rel (0) target = $region65
    $region64: #{vae_forward.1} parent=1 // pred_region
      %104 = dma.done [#allocation6], 16
    $region65: #{vae_forward.1} parent=1 // pred_fallthru
      _
    // Predicated region
    $region66: #{vae_forward.1} parent=1 // pred_check
      _
    $region67: #{vae_forward.1} parent=1 // pred_check_branch
      %106 = sbr.rel (0) target = $region69
    $region68: #{vae_forward.1} parent=1 // pred_region
      %107 = dma.done [#allocation6], 4096
    $region69: #{vae_forward.1} parent=1 // pred_fallthru
      _
    // Predicated region
    $region70: #{vae_forward.1} parent=1 // pred_check
      _
    $region71: #{vae_forward.1} parent=1 // pred_check_branch
      %109 = sbr.rel (0) target = $region73
    $region72: #{vae_forward.1} parent=1 // pred_region
      %110 = dma.done [#allocation9], 4096
    $region73: #{vae_forward.1} parent=1 // pred_fallthru
      _
    // Predicated region
    $region74: #{vae_forward.1} parent=1 // pred_check
      _
    $region75: #{vae_forward.1} parent=1 // pred_check_branch
      %112 = sbr.rel (0) target = $region77
    $region76: #{vae_forward.1} parent=1 // pred_region
      %113 = dma.done [#allocation9], 32
    $region77: #{vae_forward.1} parent=1 // pred_fallthru
      _
    %v115 = vld [vmem:[%s0] sm:$0xff]
    %v116 = vld [vmem:[%s0 + $0x8] sm:$0xff]
    %v117 = vld [vmem:[%s2] sm:$0xff]
    %v118 = vld [vmem:[%s2 + $0x8] sm:$0xff]
    %v119 = vld [vmem:[%s2 + $0x10] sm:$0xff]
    %v120 = vld [vmem:[%s2 + $0x18] sm:$0xff]
    %v121 = vld [vmem:[%s2 + $0x20] sm:$0xff]
    %v122 = vld [vmem:[%s2 + $0x28] sm:$0xff]
    %v123 = vld [vmem:[%s2 + $0x30] sm:$0xff]
    %v124 = vld [vmem:[%s2 + $0x38] sm:$0xff]
    %v125 = vld [vmem:[%s2 + $0x40] sm:$0xff]
    %v126 = vld [vmem:[%s2 + $0x48] sm:$0xff]
    %v127 = vld [vmem:[%s2 + $0x50] sm:$0xff]
    %v128 = vld [vmem:[%s2 + $0x58] sm:$0xff]
    %v129 = vld [vmem:[%s2 + $0x60] sm:$0xff]
    %v130 = vld [vmem:[%s2 + $0x68] sm:$0xff]
    %v131 = vld [vmem:[%s2 + $0x70] sm:$0xff]
    %v132 = vld [vmem:[%s2 + $0x78] sm:$0xff]
    %v133 = vld [vmem:[%s2 + $0x80] sm:$0xff]
    %v134 = vld [vmem:[%s2 + $0x88] sm:$0xff]
    %v135 = vld [vmem:[%s2 + $0x90] sm:$0xff]
    %v136 = vld [vmem:[%s2 + $0x98] sm:$0xff]
    %v137 = vld [vmem:[%s2 + $0xa0] sm:$0xff]
    %v138 = vld [vmem:[%s2 + $0xa8] sm:$0xff]
    %v139 = vld [vmem:[%s2 + $0xb0] sm:$0xff]
    %v140 = vld [vmem:[%s2 + $0xb8] sm:$0xff]
    %v141 = vld [vmem:[%s2 + $0xc0] sm:$0xff]
    %v142 = vld [vmem:[%s2 + $0xc8] sm:$0xff]
    %v143 = vld [vmem:[%s2 + $0xd0] sm:$0xff]
    %v144 = vld [vmem:[%s2 + $0xd8] sm:$0xff]
    %v145 = vld [vmem:[%s2 + $0xe0] sm:$0xff]
    %v146 = vld [vmem:[%s2 + $0xe8] sm:$0xff]
    %v147 = vld [vmem:[%s2 + $0xf0] sm:$0xff]
    %v148 = vld [vmem:[%s2 + $0xf8] sm:$0xff]
    %v149 = vld [vmem:[%s3] sm:$0x3]
    %v151 = vlaneseq
    %v152 = vshrl.u32 %v151, 7
    %v153 = vsub.s32 0, %v152
    %v154 = vrot.slane %v149, %v153
    %v155 = vlaneseq
    %v156 = vshrl.u32 %v155, 7
    %v157 = vsub.s32 1, %v156
    %v158 = vrot.slane %v149, %v157
    %v163 = vunpack.c.l.b16 %v115
    %v164 = vunpack.c.h.b16 %v115
    %v165 = vunpack.c.l.b16 %v116
    %v166 = vunpack.c.h.b16 %v116
    %v167 = vpack.c.b16 %v165, %v163
    %v168 = vpack.c.b16 %v166, %v164
    %v203 = vunpack.c.l.b16 %v117
    %v204 = vunpack.c.h.b16 %v117
    %v205 = vunpack.c.l.b16 %v118
    %v206 = vunpack.c.h.b16 %v118
    %v207 = vunpack.c.l.b16 %v119
    %v208 = vunpack.c.h.b16 %v119
    %v209 = vunpack.c.l.b16 %v120
    %v210 = vunpack.c.h.b16 %v120
    %v211 = vunpack.c.l.b16 %v121
    %v212 = vunpack.c.h.b16 %v121
    %v213 = vunpack.c.l.b16 %v122
    %v214 = vunpack.c.h.b16 %v122
    %v215 = vunpack.c.l.b16 %v123
    %v216 = vunpack.c.h.b16 %v123
    %v217 = vunpack.c.l.b16 %v124
    %v218 = vunpack.c.h.b16 %v124
    %v219 = vunpack.c.l.b16 %v125
    %v220 = vunpack.c.h.b16 %v125
    %v221 = vunpack.c.l.b16 %v126
    %v222 = vunpack.c.h.b16 %v126
    %v223 = vunpack.c.l.b16 %v127
    %v224 = vunpack.c.h.b16 %v127
    %v225 = vunpack.c.l.b16 %v128
    %v226 = vunpack.c.h.b16 %v128
    %v227 = vunpack.c.l.b16 %v129
    %v228 = vunpack.c.h.b16 %v129
    %v229 = vunpack.c.l.b16 %v130
    %v230 = vunpack.c.h.b16 %v130
    %v231 = vunpack.c.l.b16 %v131
    %v232 = vunpack.c.h.b16 %v131
    %v233 = vunpack.c.l.b16 %v132
    %v234 = vunpack.c.h.b16 %v132
    %v235 = vunpack.c.l.b16 %v133
    %v236 = vunpack.c.h.b16 %v133
    %v237 = vunpack.c.l.b16 %v134
    %v238 = vunpack.c.h.b16 %v134
    %v239 = vunpack.c.l.b16 %v135
    %v240 = vunpack.c.h.b16 %v135
    %v241 = vunpack.c.l.b16 %v136
    %v242 = vunpack.c.h.b16 %v136
    %v243 = vunpack.c.l.b16 %v137
    %v244 = vunpack.c.h.b16 %v137
    %v245 = vunpack.c.l.b16 %v138
    %v246 = vunpack.c.h.b16 %v138
    %v247 = vunpack.c.l.b16 %v139
    %v248 = vunpack.c.h.b16 %v139
    %v249 = vunpack.c.l.b16 %v140
    %v250 = vunpack.c.h.b16 %v140
    %v251 = vunpack.c.l.b16 %v141
    %v252 = vunpack.c.h.b16 %v141
    %v253 = vunpack.c.l.b16 %v142
    %v254 = vunpack.c.h.b16 %v142
    %v255 = vunpack.c.l.b16 %v143
    %v256 = vunpack.c.h.b16 %v143
    %v257 = vunpack.c.l.b16 %v144
    %v258 = vunpack.c.h.b16 %v144
    %v259 = vunpack.c.l.b16 %v145
    %v260 = vunpack.c.h.b16 %v145
    %v261 = vunpack.c.l.b16 %v146
    %v262 = vunpack.c.h.b16 %v146
    %v263 = vunpack.c.l.b16 %v147
    %v264 = vunpack.c.h.b16 %v147
    %v265 = vunpack.c.l.b16 %v148
    %v266 = vunpack.c.h.b16 %v148
    %v267 = vpack.c.b16 %v205, %v203
    %v268 = vpack.c.b16 %v206, %v204
    %v269 = vpack.c.b16 %v209, %v207
    %v270 = vpack.c.b16 %v210, %v208
    %v271 = vpack.c.b16 %v213, %v211
    %v272 = vpack.c.b16 %v214, %v212
    %v273 = vpack.c.b16 %v217, %v215
    %v274 = vpack.c.b16 %v218, %v216
    %v275 = vpack.c.b16 %v221, %v219
    %v276 = vpack.c.b16 %v222, %v220
    %v277 = vpack.c.b16 %v225, %v223
    %v278 = vpack.c.b16 %v226, %v224
    %v279 = vpack.c.b16 %v229, %v227
    %v280 = vpack.c.b16 %v230, %v228
    %v281 = vpack.c.b16 %v233, %v231
    %v282 = vpack.c.b16 %v234, %v232
    %v283 = vpack.c.b16 %v237, %v235
    %v284 = vpack.c.b16 %v238, %v236
    %v285 = vpack.c.b16 %v241, %v239
    %v286 = vpack.c.b16 %v242, %v240
    %v287 = vpack.c.b16 %v245, %v243
    %v288 = vpack.c.b16 %v246, %v244
    %v289 = vpack.c.b16 %v249, %v247
    %v290 = vpack.c.b16 %v250, %v248
    %v291 = vpack.c.b16 %v253, %v251
    %v292 = vpack.c.b16 %v254, %v252
    %v293 = vpack.c.b16 %v257, %v255
    %v294 = vpack.c.b16 %v258, %v256
    %v295 = vpack.c.b16 %v261, %v259
    %v296 = vpack.c.b16 %v262, %v260
    %v297 = vpack.c.b16 %v265, %v263
    %v298 = vpack.c.b16 %v266, %v264
    %331 = vmatprep.subr.bf16.mxu0 %v282
    %332 = vmatpush1.bf16.msra.mxu0 %v281
    %333 = vmatprep.subr.bf16.mxu0 %v280
    %334 = vmatpush1.bf16.msra.mxu0 %v279
    %335 = vmatprep.subr.bf16.mxu0 %v278
    %336 = vmatpush1.bf16.msra.mxu0 %v277
    %337 = vmatprep.subr.bf16.mxu0 %v276
    %338 = vmatpush1.bf16.msra.mxu0 %v275
    %339 = vmatprep.subr.bf16.mxu0 %v274
    %340 = vmatpush1.bf16.msra.mxu0 %v273
    %341 = vmatprep.subr.bf16.mxu0 %v272
    %342 = vmatpush1.bf16.msra.mxu0 %v271
    %343 = vmatprep.subr.bf16.mxu0 %v270
    %344 = vmatpush1.bf16.msra.mxu0 %v269
    %345 = vmatprep.subr.bf16.mxu0 %v268
    %346 = vmatpush1.bf16.msra.mxu0 %v267
    %347 = vmatprep.subr.bf16.mxu0 %v298
    %348 = vmatpush2.bf16.msra.mxu0 %v297
    %349 = vmatprep.subr.bf16.mxu0 %v296
    %350 = vmatpush2.bf16.msra.mxu0 %v295
    %351 = vmatprep.subr.bf16.mxu0 %v294
    %352 = vmatpush2.bf16.msra.mxu0 %v293
    %353 = vmatprep.subr.bf16.mxu0 %v292
    %354 = vmatpush2.bf16.msra.mxu0 %v291
    %355 = vmatprep.subr.bf16.mxu0 %v290
    %356 = vmatpush2.bf16.msra.mxu0 %v289
    %357 = vmatprep.subr.bf16.mxu0 %v288
    %358 = vmatpush2.bf16.msra.mxu0 %v287
    %359 = vmatprep.subr.bf16.mxu0 %v286
    %360 = vmatpush2.bf16.msra.mxu0 %v285
    %361 = vmatprep.subr.bf16.mxu0 %v284
    %362 = vmatpush2.bf16.msra.mxu0 %v283
    %363 = vmatprep.mubr.bf16.mxu0 %v168
    %364 = vmatmul.mubr.bf16.gmra.mxu0 %v167
    %v365 = vpop.f32.mrf.mxu0
    %v366 = vadd.f32 %v154, %v365
    %v367 = vpop.f32.mrf.mxu0
    %v368 = vadd.f32 %v158, %v367
    %v369 = vpop.f32.mrf.mxu0
    %v370 = vadd.f32 %v154, %v369
    %v371 = vpop.f32.mrf.mxu0
    %v372 = vadd.f32 %v158, %v371
    %373 = vdwg.mxu0
    %v374 = vmax.f32 %v366, 0.0
    %v375 = vmax.f32 %v368, 0.0
    %v376 = vmax.f32 %v370, 0.0
    %v377 = vmax.f32 %v372, 0.0
    %v378 = vpack.c.bf16 %v376, %v374
    %v379 = vpack.c.bf16 %v377, %v375
    %v380 = vld [vmem:[%s4] sm:$0xff]
    %v381 = vld [vmem:[%s4 + $0x8] sm:$0xff]
    %v382 = vld [vmem:[%s4 + $0x10] sm:$0xff]
    %v383 = vld [vmem:[%s4 + $0x18] sm:$0xff]
    %v384 = vld [vmem:[%s4 + $0x20] sm:$0xff]
    %v385 = vld [vmem:[%s4 + $0x28] sm:$0xff]
    %v386 = vld [vmem:[%s4 + $0x30] sm:$0xff]
    %v387 = vld [vmem:[%s4 + $0x38] sm:$0xff]
    %v388 = vld [vmem:[%s4 + $0x40] sm:$0xff]
    %v389 = vld [vmem:[%s4 + $0x48] sm:$0xff]
    %v390 = vld [vmem:[%s4 + $0x50] sm:$0xff]
    %v391 = vld [vmem:[%s4 + $0x58] sm:$0xff]
    %v392 = vld [vmem:[%s4 + $0x60] sm:$0xff]
    %v393 = vld [vmem:[%s4 + $0x68] sm:$0xff]
    %v394 = vld [vmem:[%s4 + $0x70] sm:$0xff]
    %v395 = vld [vmem:[%s4 + $0x78] sm:$0xff]
    %v396 = vld [vmem:[%s4 + $0x80] sm:$0xff]
    %v397 = vld [vmem:[%s4 + $0x88] sm:$0xff]
    %v398 = vld [vmem:[%s4 + $0x90] sm:$0xff]
    %v399 = vld [vmem:[%s4 + $0x98] sm:$0xff]
    %v400 = vld [vmem:[%s4 + $0xa0] sm:$0xff]
    %v401 = vld [vmem:[%s4 + $0xa8] sm:$0xff]
    %v402 = vld [vmem:[%s4 + $0xb0] sm:$0xff]
    %v403 = vld [vmem:[%s4 + $0xb8] sm:$0xff]
    %v404 = vld [vmem:[%s4 + $0xc0] sm:$0xff]
    %v405 = vld [vmem:[%s4 + $0xc8] sm:$0xff]
    %v406 = vld [vmem:[%s4 + $0xd0] sm:$0xff]
    %v407 = vld [vmem:[%s4 + $0xd8] sm:$0xff]
    %v408 = vld [vmem:[%s4 + $0xe0] sm:$0xff]
    %v409 = vld [vmem:[%s4 + $0xe8] sm:$0xff]
    %v410 = vld [vmem:[%s4 + $0xf0] sm:$0xff]
    %v411 = vld [vmem:[%s4 + $0xf8] sm:$0xff]
    %v412 = vld [vmem:[%s5] sm:$0x3]
    %v414 = vlaneseq
    %v415 = vshrl.u32 %v414, 7
    %v416 = vsub.s32 0, %v415
    %v417 = vrot.slane %v412, %v416
    %v418 = vlaneseq
    %v419 = vshrl.u32 %v418, 7
    %v420 = vsub.s32 1, %v419
    %v421 = vrot.slane %v412, %v420
    %v456 = vunpack.c.l.b16 %v380
    %v457 = vunpack.c.h.b16 %v380
    %v458 = vunpack.c.l.b16 %v381
    %v459 = vunpack.c.h.b16 %v381
    %v460 = vunpack.c.l.b16 %v382
    %v461 = vunpack.c.h.b16 %v382
    %v462 = vunpack.c.l.b16 %v383
    %v463 = vunpack.c.h.b16 %v383
    %v464 = vunpack.c.l.b16 %v384
    %v465 = vunpack.c.h.b16 %v384
    %v466 = vunpack.c.l.b16 %v385
    %v467 = vunpack.c.h.b16 %v385
    %v468 = vunpack.c.l.b16 %v386
    %v469 = vunpack.c.h.b16 %v386
    %v470 = vunpack.c.l.b16 %v387
    %v471 = vunpack.c.h.b16 %v387
    %v472 = vunpack.c.l.b16 %v388
    %v473 = vunpack.c.h.b16 %v388
    %v474 = vunpack.c.l.b16 %v389
    %v475 = vunpack.c.h.b16 %v389
    %v476 = vunpack.c.l.b16 %v390
    %v477 = vunpack.c.h.b16 %v390
    %v478 = vunpack.c.l.b16 %v391
    %v479 = vunpack.c.h.b16 %v391
    %v480 = vunpack.c.l.b16 %v392
    %v481 = vunpack.c.h.b16 %v392
    %v482 = vunpack.c.l.b16 %v393
    %v483 = vunpack.c.h.b16 %v393
    %v484 = vunpack.c.l.b16 %v394
    %v485 = vunpack.c.h.b16 %v394
    %v486 = vunpack.c.l.b16 %v395
    %v487 = vunpack.c.h.b16 %v395
    %v488 = vunpack.c.l.b16 %v396
    %v489 = vunpack.c.h.b16 %v396
    %v490 = vunpack.c.l.b16 %v397
    %v491 = vunpack.c.h.b16 %v397
    %v492 = vunpack.c.l.b16 %v398
    %v493 = vunpack.c.h.b16 %v398
    %v494 = vunpack.c.l.b16 %v399
    %v495 = vunpack.c.h.b16 %v399
    %v496 = vunpack.c.l.b16 %v400
    %v497 = vunpack.c.h.b16 %v400
    %v498 = vunpack.c.l.b16 %v401
    %v499 = vunpack.c.h.b16 %v401
    %v500 = vunpack.c.l.b16 %v402
    %v501 = vunpack.c.h.b16 %v402
    %v502 = vunpack.c.l.b16 %v403
    %v503 = vunpack.c.h.b16 %v403
    %v504 = vunpack.c.l.b16 %v404
    %v505 = vunpack.c.h.b16 %v404
    %v506 = vunpack.c.l.b16 %v405
    %v507 = vunpack.c.h.b16 %v405
    %v508 = vunpack.c.l.b16 %v406
    %v509 = vunpack.c.h.b16 %v406
    %v510 = vunpack.c.l.b16 %v407
    %v511 = vunpack.c.h.b16 %v407
    %v512 = vunpack.c.l.b16 %v408
    %v513 = vunpack.c.h.b16 %v408
    %v514 = vunpack.c.l.b16 %v409
    %v515 = vunpack.c.h.b16 %v409
    %v516 = vunpack.c.l.b16 %v410
    %v517 = vunpack.c.h.b16 %v410
    %v518 = vunpack.c.l.b16 %v411
    %v519 = vunpack.c.h.b16 %v411
    %v520 = vpack.c.b16 %v458, %v456
    %v521 = vpack.c.b16 %v459, %v457
    %v522 = vpack.c.b16 %v462, %v460
    %v523 = vpack.c.b16 %v463, %v461
    %v524 = vpack.c.b16 %v466, %v464
    %v525 = vpack.c.b16 %v467, %v465
    %v526 = vpack.c.b16 %v470, %v468
    %v527 = vpack.c.b16 %v471, %v469
    %v528 = vpack.c.b16 %v474, %v472
    %v529 = vpack.c.b16 %v475, %v473
    %v530 = vpack.c.b16 %v478, %v476
    %v531 = vpack.c.b16 %v479, %v477
    %v532 = vpack.c.b16 %v482, %v480
    %v533 = vpack.c.b16 %v483, %v481
    %v534 = vpack.c.b16 %v486, %v484
    %v535 = vpack.c.b16 %v487, %v485
    %v536 = vpack.c.b16 %v490, %v488
    %v537 = vpack.c.b16 %v491, %v489
    %v538 = vpack.c.b16 %v494, %v492
    %v539 = vpack.c.b16 %v495, %v493
    %v540 = vpack.c.b16 %v498, %v496
    %v541 = vpack.c.b16 %v499, %v497
    %v542 = vpack.c.b16 %v502, %v500
    %v543 = vpack.c.b16 %v503, %v501
    %v544 = vpack.c.b16 %v506, %v504
    %v545 = vpack.c.b16 %v507, %v505
    %v546 = vpack.c.b16 %v510, %v508
    %v547 = vpack.c.b16 %v511, %v509
    %v548 = vpack.c.b16 %v514, %v512
    %v549 = vpack.c.b16 %v515, %v513
    %v550 = vpack.c.b16 %v518, %v516
    %v551 = vpack.c.b16 %v519, %v517
    %584 = vmatprep.subr.bf16.mxu0 %v535
    %585 = vmatpush1.bf16.msra.mxu0 %v534
    %586 = vmatprep.subr.bf16.mxu0 %v533
    %587 = vmatpush1.bf16.msra.mxu0 %v532
    %588 = vmatprep.subr.bf16.mxu0 %v531
    %589 = vmatpush1.bf16.msra.mxu0 %v530
    %590 = vmatprep.subr.bf16.mxu0 %v529
    %591 = vmatpush1.bf16.msra.mxu0 %v528
    %592 = vmatprep.subr.bf16.mxu0 %v527
    %593 = vmatpush1.bf16.msra.mxu0 %v526
    %594 = vmatprep.subr.bf16.mxu0 %v525
    %595 = vmatpush1.bf16.msra.mxu0 %v524
    %596 = vmatprep.subr.bf16.mxu0 %v523
    %597 = vmatpush1.bf16.msra.mxu0 %v522
    %598 = vmatprep.subr.bf16.mxu0 %v521
    %599 = vmatpush1.bf16.msra.mxu0 %v520
    %600 = vmatprep.subr.bf16.mxu0 %v551
    %601 = vmatpush2.bf16.msra.mxu0 %v550
    %602 = vmatprep.subr.bf16.mxu0 %v549
    %603 = vmatpush2.bf16.msra.mxu0 %v548
    %604 = vmatprep.subr.bf16.mxu0 %v547
    %605 = vmatpush2.bf16.msra.mxu0 %v546
    %606 = vmatprep.subr.bf16.mxu0 %v545
    %607 = vmatpush2.bf16.msra.mxu0 %v544
    %608 = vmatprep.subr.bf16.mxu0 %v543
    %609 = vmatpush2.bf16.msra.mxu0 %v542
    %610 = vmatprep.subr.bf16.mxu0 %v541
    %611 = vmatpush2.bf16.msra.mxu0 %v540
    %612 = vmatprep.subr.bf16.mxu0 %v539
    %613 = vmatpush2.bf16.msra.mxu0 %v538
    %614 = vmatprep.subr.bf16.mxu0 %v537
    %615 = vmatpush2.bf16.msra.mxu0 %v536
    %616 = vmatprep.mubr.bf16.mxu0 %v379
    %617 = vmatmul.mubr.bf16.gmra.mxu0 %v378
    %v618 = vpop.f32.mrf.mxu0
    %v619 = vadd.f32 %v417, %v618
    %v620 = vpop.f32.mrf.mxu0
    %v621 = vadd.f32 %v421, %v620
    %v622 = vpop.f32.mrf.mxu0
    %v623 = vadd.f32 %v417, %v622
    %v624 = vpop.f32.mrf.mxu0
    %v625 = vadd.f32 %v421, %v624
    %626 = vdwg.mxu0
    %v627 = vpack.c.bf16 %v623, %v619
    %v628 = vpack.c.bf16 %v625, %v621
    %v629 = vld [vmem:[#allocation2] sm:$0xf]
    %v630 = vld [vmem:[#allocation2 + $0x4] sm:$0xf]
    %v631 = vld [vmem:[#allocation2 + $0x8] sm:$0xf]
    %v632 = vld [vmem:[#allocation2 + $0xc] sm:$0xf]
    %v633 = vld [vmem:[#allocation2 + $0x10] sm:$0xf]
    %v634 = vld [vmem:[#allocation2 + $0x14] sm:$0xf]
    %v635 = vld [vmem:[#allocation2 + $0x18] sm:$0xf]
    %v636 = vld [vmem:[#allocation2 + $0x1c] sm:$0xf]
    %v637 = vld [vmem:[#allocation2 + $0x20] sm:$0xf]
    %v638 = vld [vmem:[#allocation2 + $0x24] sm:$0xf]
    %v639 = vld [vmem:[#allocation2 + $0x28] sm:$0xf]
    %v640 = vld [vmem:[#allocation2 + $0x2c] sm:$0xf]
    %v641 = vld [vmem:[#allocation2 + $0x30] sm:$0xf]
    %v642 = vld [vmem:[#allocation2 + $0x34] sm:$0xf]
    %v643 = vld [vmem:[#allocation2 + $0x38] sm:$0xf]
    %v644 = vld [vmem:[#allocation2 + $0x3c] sm:$0xf]
    %v645 = vld [vmem:[#allocation2 + $0x40] sm:$0xf]
    %v646 = vld [vmem:[#allocation2 + $0x44] sm:$0xf]
    %v647 = vld [vmem:[#allocation2 + $0x48] sm:$0xf]
    %v648 = vld [vmem:[#allocation2 + $0x4c] sm:$0xf]
    %v649 = vld [vmem:[#allocation2 + $0x50] sm:$0xf]
    %v650 = vld [vmem:[#allocation2 + $0x54] sm:$0xf]
    %v651 = vld [vmem:[#allocation2 + $0x58] sm:$0xf]
    %v652 = vld [vmem:[#allocation2 + $0x5c] sm:$0xf]
    %v653 = vld [vmem:[#allocation2 + $0x60] sm:$0xf]
    %v654 = vld [vmem:[#allocation2 + $0x64] sm:$0xf]
    %v655 = vld [vmem:[#allocation2 + $0x68] sm:$0xf]
    %v656 = vld [vmem:[#allocation2 + $0x6c] sm:$0xf]
    %v657 = vld [vmem:[#allocation2 + $0x70] sm:$0xf]
    %v658 = vld [vmem:[#allocation2 + $0x74] sm:$0xf]
    %v659 = vld [vmem:[#allocation2 + $0x78] sm:$0xf]
    %v660 = vld [vmem:[#allocation2 + $0x7c] sm:$0xf]
    %v661 = vld [vmem:[#allocation5] sm:$0x1]
    %v663 = vlaneseq
    %v664 = vshrl.u32 %v663, 7
    %v665 = vsub.s32 0, %v664
    %v666 = vrot.slane %v661, %v665
    %v700 = vunpack.c.l.b16 %v629
    %v701 = vunpack.c.l.b16 %v630
    %v702 = vunpack.c.l.b16 %v631
    %v703 = vunpack.c.l.b16 %v632
    %v704 = vunpack.c.l.b16 %v633
    %v705 = vunpack.c.l.b16 %v634
    %v706 = vunpack.c.l.b16 %v635
    %v707 = vunpack.c.l.b16 %v636
    %v708 = vunpack.c.l.b16 %v637
    %v709 = vunpack.c.l.b16 %v638
    %v710 = vunpack.c.l.b16 %v639
    %v711 = vunpack.c.l.b16 %v640
    %v712 = vunpack.c.l.b16 %v641
    %v713 = vunpack.c.l.b16 %v642
    %v714 = vunpack.c.l.b16 %v643
    %v715 = vunpack.c.l.b16 %v644
    %v716 = vunpack.c.l.b16 %v645
    %v717 = vunpack.c.l.b16 %v646
    %v718 = vunpack.c.l.b16 %v647
    %v719 = vunpack.c.l.b16 %v648
    %v720 = vunpack.c.l.b16 %v649
    %v721 = vunpack.c.l.b16 %v650
    %v722 = vunpack.c.l.b16 %v651
    %v723 = vunpack.c.l.b16 %v652
    %v724 = vunpack.c.l.b16 %v653
    %v725 = vunpack.c.l.b16 %v654
    %v726 = vunpack.c.l.b16 %v655
    %v727 = vunpack.c.l.b16 %v656
    %v728 = vunpack.c.l.b16 %v657
    %v729 = vunpack.c.l.b16 %v658
    %v730 = vunpack.c.l.b16 %v659
    %v731 = vunpack.c.l.b16 %v660
    %v732 = vpack.c.b16 %v701, %v700
    %v733 = vpack.c.b16 %v703, %v702
    %v734 = vpack.c.b16 %v705, %v704
    %v735 = vpack.c.b16 %v707, %v706
    %v736 = vpack.c.b16 %v709, %v708
    %v737 = vpack.c.b16 %v711, %v710
    %v738 = vpack.c.b16 %v713, %v712
    %v739 = vpack.c.b16 %v715, %v714
    %v740 = vpack.c.b16 %v717, %v716
    %v741 = vpack.c.b16 %v719, %v718
    %v742 = vpack.c.b16 %v721, %v720
    %v743 = vpack.c.b16 %v723, %v722
    %v744 = vpack.c.b16 %v725, %v724
    %v745 = vpack.c.b16 %v727, %v726
    %v746 = vpack.c.b16 %v729, %v728
    %v747 = vpack.c.b16 %v731, %v730
    %764 = vmatprep.subr.bf16.mxu0 0
    %765 = vmatpush1.bf16.msra.mxu0 %v739
    %766 = vmatprep.subr.bf16.mxu0 0
    %767 = vmatpush1.bf16.msra.mxu0 %v738
    %768 = vmatprep.subr.bf16.mxu0 0
    %769 = vmatpush1.bf16.msra.mxu0 %v737
    %770 = vmatprep.subr.bf16.mxu0 0
    %771 = vmatpush1.bf16.msra.mxu0 %v736
    %772 = vmatprep.subr.bf16.mxu0 0
    %773 = vmatpush1.bf16.msra.mxu0 %v735
    %774 = vmatprep.subr.bf16.mxu0 0
    %775 = vmatpush1.bf16.msra.mxu0 %v734
    %776 = vmatprep.subr.bf16.mxu0 0
    %777 = vmatpush1.bf16.msra.mxu0 %v733
    %778 = vmatprep.subr.bf16.mxu0 0
    %779 = vmatpush1.bf16.msra.mxu0 %v732
    %780 = vmatprep.subr.bf16.mxu0 0
    %781 = vmatpush2.bf16.msra.mxu0 %v747
    %782 = vmatprep.subr.bf16.mxu0 0
    %783 = vmatpush2.bf16.msra.mxu0 %v746
    %784 = vmatprep.subr.bf16.mxu0 0
    %785 = vmatpush2.bf16.msra.mxu0 %v745
    %786 = vmatprep.subr.bf16.mxu0 0
    %787 = vmatpush2.bf16.msra.mxu0 %v744
    %788 = vmatprep.subr.bf16.mxu0 0
    %789 = vmatpush2.bf16.msra.mxu0 %v743
    %790 = vmatprep.subr.bf16.mxu0 0
    %791 = vmatpush2.bf16.msra.mxu0 %v742
    %792 = vmatprep.subr.bf16.mxu0 0
    %793 = vmatpush2.bf16.msra.mxu0 %v741
    %794 = vmatprep.subr.bf16.mxu0 0
    %795 = vmatpush2.bf16.msra.mxu0 %v740
    %796 = vmatprep.mubr.bf16.mxu0 %v628
    %797 = vmatmul.mubr.bf16.gmra.mxu0 %v627
    %v798 = vpop.f32.mrf.mxu0
    %v799 = vadd.f32 %v666, %v798
    %v800 = vpop.f32.mrf.mxu0
    %v801 = vpop.f32.mrf.mxu0
    %v802 = vadd.f32 %v666, %v801
    %v803 = vpop.f32.mrf.mxu0
    %804 = vdwg.mxu0
    %805 = vrot.lane.b32.xlu0 %v799, 64
    %v806 = vpop.permute.xlu0 %805
    %807 = vrot.lane.b32.xlu0 %v802, 64
    %v808 = vpop.permute.xlu0 %807
    %v809 = vmul.f32 %v806, 0.5
    %v810 = vmul.f32 %v808, 0.5
    %v811 = vmul.f32 %v809, 1.442695
    %v812 = vpow.pop %v811
    %v813 = vmul.f32 %v810, 1.442695
    %v814 = vpow.pop %v813
    %v815 = vld [vmem:[%s1] sm:$0xff]
    %v816 = vld [vmem:[%s1 + $0x8] sm:$0xff]
    %v817 = vmul.f32 %v815, %v812
    %v818 = vmul.f32 %v816, %v814
    %v819 = vadd.f32 %v817, %v799
    %v820 = vadd.f32 %v818, %v802
    %v821 = vpack.c.bf16 %v820, %v819
    %v822 = vld [vmem:[%s8] sm:$0xff]
    %v823 = vld [vmem:[%s8 + $0x8] sm:$0xff]
    %v824 = vld [vmem:[%s8 + $0x10] sm:$0xff]
    %v825 = vld [vmem:[%s8 + $0x18] sm:$0xff]
    %v826 = vld [vmem:[%s8 + $0x20] sm:$0xff]
    %v827 = vld [vmem:[%s8 + $0x28] sm:$0xff]
    %v828 = vld [vmem:[%s8 + $0x30] sm:$0xff]
    %v829 = vld [vmem:[%s8 + $0x38] sm:$0xff]
    %v830 = vld [vmem:[%s9] sm:$0x3]
    %v832 = vlaneseq
    %v833 = vshrl.u32 %v832, 7
    %v834 = vsub.s32 0, %v833
    %v835 = vrot.slane %v830, %v834
    %v836 = vlaneseq
    %v837 = vshrl.u32 %v836, 7
    %v838 = vsub.s32 1, %v837
    %v839 = vrot.slane %v830, %v838
    %v850 = vunpack.c.l.b16 %v822
    %v851 = vunpack.c.h.b16 %v822
    %v852 = vunpack.c.l.b16 %v823
    %v853 = vunpack.c.h.b16 %v823
    %v854 = vunpack.c.l.b16 %v824
    %v855 = vunpack.c.h.b16 %v824
    %v856 = vunpack.c.l.b16 %v825
    %v857 = vunpack.c.h.b16 %v825
    %v858 = vunpack.c.l.b16 %v826
    %v859 = vunpack.c.h.b16 %v826
    %v860 = vunpack.c.l.b16 %v827
    %v861 = vunpack.c.h.b16 %v827
    %v862 = vunpack.c.l.b16 %v828
    %v863 = vunpack.c.h.b16 %v828
    %v864 = vunpack.c.l.b16 %v829
    %v865 = vunpack.c.h.b16 %v829
    %v866 = vpack.c.b16 %v852, %v850
    %v867 = vpack.c.b16 %v853, %v851
    %v868 = vpack.c.b16 %v856, %v854
    %v869 = vpack.c.b16 %v857, %v855
    %v870 = vpack.c.b16 %v860, %v858
    %v871 = vpack.c.b16 %v861, %v859
    %v872 = vpack.c.b16 %v864, %v862
    %v873 = vpack.c.b16 %v865, %v863
    %vm882 = vcmask 523264
    %v884 = vsel %vm882, %v821, 0
    %886 = vmatprep.subr.bf16.mxu0 0
    %887 = vmatpush1.bf16.msra.mxu0 0
    %888 = vmatprep.subr.bf16.mxu0 0
    %889 = vmatpush1.bf16.msra.mxu0 0
    %890 = vmatprep.subr.bf16.mxu0 0
    %891 = vmatpush1.bf16.msra.mxu0 0
    %892 = vmatprep.subr.bf16.mxu0 0
    %893 = vmatpush1.bf16.msra.mxu0 0
    %894 = vmatprep.subr.bf16.mxu0 %v873
    %895 = vmatpush1.bf16.msra.mxu0 %v872
    %896 = vmatprep.subr.bf16.mxu0 %v871
    %897 = vmatpush1.bf16.msra.mxu0 %v870
    %898 = vmatprep.subr.bf16.mxu0 %v869
    %899 = vmatpush1.bf16.msra.mxu0 %v868
    %900 = vmatprep.subr.bf16.mxu0 %v867
    %901 = vmatpush1.bf16.msra.mxu0 %v866
    %902 = vmatprep.subr.bf16.mxu0 0
    %903 = vmatpush2.bf16.msra.mxu0 0
    %904 = vmatprep.subr.bf16.mxu0 0
    %905 = vmatpush2.bf16.msra.mxu0 0
    %906 = vmatprep.subr.bf16.mxu0 0
    %907 = vmatpush2.bf16.msra.mxu0 0
    %908 = vmatprep.subr.bf16.mxu0 0
    %909 = vmatpush2.bf16.msra.mxu0 0
    %910 = vmatprep.subr.bf16.mxu0 0
    %911 = vmatpush2.bf16.msra.mxu0 0
    %912 = vmatprep.subr.bf16.mxu0 0
    %913 = vmatpush2.bf16.msra.mxu0 0
    %914 = vmatprep.subr.bf16.mxu0 0
    %915 = vmatpush2.bf16.msra.mxu0 0
    %916 = vmatprep.subr.bf16.mxu0 0
    %917 = vmatpush2.bf16.msra.mxu0 0
    %918 = vmatprep.mubr.bf16.mxu0 0
    %919 = vmatmul.mubr.bf16.gmra.mxu0 %v884
    %v920 = vpop.f32.mrf.mxu0
    %v921 = vadd.f32 %v835, %v920
    %v922 = vpop.f32.mrf.mxu0
    %v923 = vadd.f32 %v839, %v922
    %v924 = vpop.f32.mrf.mxu0
    %v925 = vadd.f32 %v835, %v924
    %v926 = vpop.f32.mrf.mxu0
    %v927 = vadd.f32 %v839, %v926
    %928 = vdwg.mxu0
    %v929 = vmax.f32 %v921, 0.0
    %v930 = vmax.f32 %v923, 0.0
    %v931 = vmax.f32 %v925, 0.0
    %v932 = vmax.f32 %v927, 0.0
    %v933 = vpack.c.bf16 %v931, %v929
    %v934 = vpack.c.bf16 %v932, %v930
    %v935 = vld [vmem:[#allocation7] sm:$0xff]
    %v936 = vld [vmem:[#allocation7 + $0x8] sm:$0xff]
    %v937 = vld [vmem:[#allocation7 + $0x10] sm:$0xff]
    %v938 = vld [vmem:[#allocation7 + $0x18] sm:$0xff]
    %v939 = vld [vmem:[#allocation7 + $0x20] sm:$0xff]
    %v940 = vld [vmem:[#allocation7 + $0x28] sm:$0xff]
    %v941 = vld [vmem:[#allocation7 + $0x30] sm:$0xff]
    %v942 = vld [vmem:[#allocation7 + $0x38] sm:$0xff]
    %v943 = vld [vmem:[#allocation7 + $0x40] sm:$0xff]
    %v944 = vld [vmem:[#allocation7 + $0x48] sm:$0xff]
    %v945 = vld [vmem:[#allocation7 + $0x50] sm:$0xff]
    %v946 = vld [vmem:[#allocation7 + $0x58] sm:$0xff]
    %v947 = vld [vmem:[#allocation7 + $0x60] sm:$0xff]
    %v948 = vld [vmem:[#allocation7 + $0x68] sm:$0xff]
    %v949 = vld [vmem:[#allocation7 + $0x70] sm:$0xff]
    %v950 = vld [vmem:[#allocation7 + $0x78] sm:$0xff]
    %v951 = vld [vmem:[#allocation7 + $0x80] sm:$0xff]
    %v952 = vld [vmem:[#allocation7 + $0x88] sm:$0xff]
    %v953 = vld [vmem:[#allocation7 + $0x90] sm:$0xff]
    %v954 = vld [vmem:[#allocation7 + $0x98] sm:$0xff]
    %v955 = vld [vmem:[#allocation7 + $0xa0] sm:$0xff]
    %v956 = vld [vmem:[#allocation7 + $0xa8] sm:$0xff]
    %v957 = vld [vmem:[#allocation7 + $0xb0] sm:$0xff]
    %v958 = vld [vmem:[#allocation7 + $0xb8] sm:$0xff]
    %v959 = vld [vmem:[#allocation7 + $0xc0] sm:$0xff]
    %v960 = vld [vmem:[#allocation7 + $0xc8] sm:$0xff]
    %v961 = vld [vmem:[#allocation7 + $0xd0] sm:$0xff]
    %v962 = vld [vmem:[#allocation7 + $0xd8] sm:$0xff]
    %v963 = vld [vmem:[#allocation7 + $0xe0] sm:$0xff]
    %v964 = vld [vmem:[#allocation7 + $0xe8] sm:$0xff]
    %v965 = vld [vmem:[#allocation7 + $0xf0] sm:$0xff]
    %v966 = vld [vmem:[#allocation7 + $0xf8] sm:$0xff]
    %v967 = vld [vmem:[%s11] sm:$0x3]
    %v969 = vlaneseq
    %v970 = vshrl.u32 %v969, 7
    %v971 = vsub.s32 0, %v970
    %v972 = vrot.slane %v967, %v971
    %v973 = vlaneseq
    %v974 = vshrl.u32 %v973, 7
    %v975 = vsub.s32 1, %v974
    %v976 = vrot.slane %v967, %v975
    %v1011 = vunpack.c.l.b16 %v935
    %v1012 = vunpack.c.h.b16 %v935
    %v1013 = vunpack.c.l.b16 %v936
    %v1014 = vunpack.c.h.b16 %v936
    %v1015 = vunpack.c.l.b16 %v937
    %v1016 = vunpack.c.h.b16 %v937
    %v1017 = vunpack.c.l.b16 %v938
    %v1018 = vunpack.c.h.b16 %v938
    %v1019 = vunpack.c.l.b16 %v939
    %v1020 = vunpack.c.h.b16 %v939
    %v1021 = vunpack.c.l.b16 %v940
    %v1022 = vunpack.c.h.b16 %v940
    %v1023 = vunpack.c.l.b16 %v941
    %v1024 = vunpack.c.h.b16 %v941
    %v1025 = vunpack.c.l.b16 %v942
    %v1026 = vunpack.c.h.b16 %v942
    %v1027 = vunpack.c.l.b16 %v943
    %v1028 = vunpack.c.h.b16 %v943
    %v1029 = vunpack.c.l.b16 %v944
    %v1030 = vunpack.c.h.b16 %v944
    %v1031 = vunpack.c.l.b16 %v945
    %v1032 = vunpack.c.h.b16 %v945
    %v1033 = vunpack.c.l.b16 %v946
    %v1034 = vunpack.c.h.b16 %v946
    %v1035 = vunpack.c.l.b16 %v947
    %v1036 = vunpack.c.h.b16 %v947
    %v1037 = vunpack.c.l.b16 %v948
    %v1038 = vunpack.c.h.b16 %v948
    %v1039 = vunpack.c.l.b16 %v949
    %v1040 = vunpack.c.h.b16 %v949
    %v1041 = vunpack.c.l.b16 %v950
    %v1042 = vunpack.c.h.b16 %v950
    %v1043 = vunpack.c.l.b16 %v951
    %v1044 = vunpack.c.h.b16 %v951
    %v1045 = vunpack.c.l.b16 %v952
    %v1046 = vunpack.c.h.b16 %v952
    %v1047 = vunpack.c.l.b16 %v953
    %v1048 = vunpack.c.h.b16 %v953
    %v1049 = vunpack.c.l.b16 %v954
    %v1050 = vunpack.c.h.b16 %v954
    %v1051 = vunpack.c.l.b16 %v955
    %v1052 = vunpack.c.h.b16 %v955
    %v1053 = vunpack.c.l.b16 %v956
    %v1054 = vunpack.c.h.b16 %v956
    %v1055 = vunpack.c.l.b16 %v957
    %v1056 = vunpack.c.h.b16 %v957
    %v1057 = vunpack.c.l.b16 %v958
    %v1058 = vunpack.c.h.b16 %v958
    %v1059 = vunpack.c.l.b16 %v959
    %v1060 = vunpack.c.h.b16 %v959
    %v1061 = vunpack.c.l.b16 %v960
    %v1062 = vunpack.c.h.b16 %v960
    %v1063 = vunpack.c.l.b16 %v961
    %v1064 = vunpack.c.h.b16 %v961
    %v1065 = vunpack.c.l.b16 %v962
    %v1066 = vunpack.c.h.b16 %v962
    %v1067 = vunpack.c.l.b16 %v963
    %v1068 = vunpack.c.h.b16 %v963
    %v1069 = vunpack.c.l.b16 %v964
    %v1070 = vunpack.c.h.b16 %v964
    %v1071 = vunpack.c.l.b16 %v965
    %v1072 = vunpack.c.h.b16 %v965
    %v1073 = vunpack.c.l.b16 %v966
    %v1074 = vunpack.c.h.b16 %v966
    %v1075 = vpack.c.b16 %v1013, %v1011
    %v1076 = vpack.c.b16 %v1014, %v1012
    %v1077 = vpack.c.b16 %v1017, %v1015
    %v1078 = vpack.c.b16 %v1018, %v1016
    %v1079 = vpack.c.b16 %v1021, %v1019
    %v1080 = vpack.c.b16 %v1022, %v1020
    %v1081 = vpack.c.b16 %v1025, %v1023
    %v1082 = vpack.c.b16 %v1026, %v1024
    %v1083 = vpack.c.b16 %v1029, %v1027
    %v1084 = vpack.c.b16 %v1030, %v1028
    %v1085 = vpack.c.b16 %v1033, %v1031
    %v1086 = vpack.c.b16 %v1034, %v1032
    %v1087 = vpack.c.b16 %v1037, %v1035
    %v1088 = vpack.c.b16 %v1038, %v1036
    %v1089 = vpack.c.b16 %v1041, %v1039
    %v1090 = vpack.c.b16 %v1042, %v1040
    %v1091 = vpack.c.b16 %v1045, %v1043
    %v1092 = vpack.c.b16 %v1046, %v1044
    %v1093 = vpack.c.b16 %v1049, %v1047
    %v1094 = vpack.c.b16 %v1050, %v1048
    %v1095 = vpack.c.b16 %v1053, %v1051
    %v1096 = vpack.c.b16 %v1054, %v1052
    %v1097 = vpack.c.b16 %v1057, %v1055
    %v1098 = vpack.c.b16 %v1058, %v1056
    %v1099 = vpack.c.b16 %v1061, %v1059
    %v1100 = vpack.c.b16 %v1062, %v1060
    %v1101 = vpack.c.b16 %v1065, %v1063
    %v1102 = vpack.c.b16 %v1066, %v1064
    %v1103 = vpack.c.b16 %v1069, %v1067
    %v1104 = vpack.c.b16 %v1070, %v1068
    %v1105 = vpack.c.b16 %v1073, %v1071
    %v1106 = vpack.c.b16 %v1074, %v1072
    %1139 = vmatprep.subr.bf16.mxu0 %v1090
    %1140 = vmatpush1.bf16.msra.mxu0 %v1089
    %1141 = vmatprep.subr.bf16.mxu0 %v1088
    %1142 = vmatpush1.bf16.msra.mxu0 %v1087
    %1143 = vmatprep.subr.bf16.mxu0 %v1086
    %1144 = vmatpush1.bf16.msra.mxu0 %v1085
    %1145 = vmatprep.subr.bf16.mxu0 %v1084
    %1146 = vmatpush1.bf16.msra.mxu0 %v1083
    %1147 = vmatprep.subr.bf16.mxu0 %v1082
    %1148 = vmatpush1.bf16.msra.mxu0 %v1081
    %1149 = vmatprep.subr.bf16.mxu0 %v1080
    %1150 = vmatpush1.bf16.msra.mxu0 %v1079
    %1151 = vmatprep.subr.bf16.mxu0 %v1078
    %1152 = vmatpush1.bf16.msra.mxu0 %v1077
    %1153 = vmatprep.subr.bf16.mxu0 %v1076
    %1154 = vmatpush1.bf16.msra.mxu0 %v1075
    %1155 = vmatprep.subr.bf16.mxu0 %v1106
    %1156 = vmatpush2.bf16.msra.mxu0 %v1105
    %1157 = vmatprep.subr.bf16.mxu0 %v1104
    %1158 = vmatpush2.bf16.msra.mxu0 %v1103
    %1159 = vmatprep.subr.bf16.mxu0 %v1102
    %1160 = vmatpush2.bf16.msra.mxu0 %v1101
    %1161 = vmatprep.subr.bf16.mxu0 %v1100
    %1162 = vmatpush2.bf16.msra.mxu0 %v1099
    %1163 = vmatprep.subr.bf16.mxu0 %v1098
    %1164 = vmatpush2.bf16.msra.mxu0 %v1097
    %1165 = vmatprep.subr.bf16.mxu0 %v1096
    %1166 = vmatpush2.bf16.msra.mxu0 %v1095
    %1167 = vmatprep.subr.bf16.mxu0 %v1094
    %1168 = vmatpush2.bf16.msra.mxu0 %v1093
    %1169 = vmatprep.subr.bf16.mxu0 %v1092
    %1170 = vmatpush2.bf16.msra.mxu0 %v1091
    %1171 = vmatprep.mubr.bf16.mxu0 %v934
    %1172 = vmatmul.mubr.bf16.gmra.mxu0 %v933
    %v1173 = vpop.f32.mrf.mxu0
    %v1174 = vadd.f32 %v972, %v1173
    %v1175 = vpop.f32.mrf.mxu0
    %v1176 = vadd.f32 %v976, %v1175
    %v1177 = vpop.f32.mrf.mxu0
    %v1178 = vadd.f32 %v972, %v1177
    %v1179 = vpop.f32.mrf.mxu0
    %v1180 = vadd.f32 %v976, %v1179
    %1181 = vdwg.mxu0
    %v1182 = vmax.f32 %v1174, 0.0
    %v1183 = vmax.f32 %v1176, 0.0
    %v1184 = vmax.f32 %v1178, 0.0
    %v1185 = vmax.f32 %v1180, 0.0
    %v1186 = vpack.c.bf16 %v1184, %v1182
    %v1187 = vpack.c.bf16 %v1185, %v1183
    %v1188 = vld [vmem:[#allocation8] sm:$0xff]
    %v1189 = vld [vmem:[#allocation8 + $0x8] sm:$0xff]
    %v1190 = vld [vmem:[#allocation8 + $0x10] sm:$0xff]
    %v1191 = vld [vmem:[#allocation8 + $0x18] sm:$0xff]
    %v1192 = vld [vmem:[#allocation8 + $0x20] sm:$0xff]
    %v1193 = vld [vmem:[#allocation8 + $0x28] sm:$0xff]
    %v1194 = vld [vmem:[#allocation8 + $0x30] sm:$0xff]
    %v1195 = vld [vmem:[#allocation8 + $0x38] sm:$0xff]
    %v1196 = vld [vmem:[#allocation8 + $0x40] sm:$0xff]
    %v1197 = vld [vmem:[#allocation8 + $0x48] sm:$0xff]
    %v1198 = vld [vmem:[#allocation8 + $0x50] sm:$0xff]
    %v1199 = vld [vmem:[#allocation8 + $0x58] sm:$0xff]
    %v1200 = vld [vmem:[#allocation8 + $0x60] sm:$0xff]
    %v1201 = vld [vmem:[#allocation8 + $0x68] sm:$0xff]
    %v1202 = vld [vmem:[#allocation8 + $0x70] sm:$0xff]
    %v1203 = vld [vmem:[#allocation8 + $0x78] sm:$0xff]
    %v1204 = vld [vmem:[#allocation8 + $0x80] sm:$0xff]
    %v1205 = vld [vmem:[#allocation8 + $0x88] sm:$0xff]
    %v1206 = vld [vmem:[#allocation8 + $0x90] sm:$0xff]
    %v1207 = vld [vmem:[#allocation8 + $0x98] sm:$0xff]
    %v1208 = vld [vmem:[#allocation8 + $0xa0] sm:$0xff]
    %v1209 = vld [vmem:[#allocation8 + $0xa8] sm:$0xff]
    %v1210 = vld [vmem:[#allocation8 + $0xb0] sm:$0xff]
    %v1211 = vld [vmem:[#allocation8 + $0xb8] sm:$0xff]
    %v1212 = vld [vmem:[#allocation8 + $0xc0] sm:$0xff]
    %v1213 = vld [vmem:[#allocation8 + $0xc8] sm:$0xff]
    %v1214 = vld [vmem:[#allocation8 + $0xd0] sm:$0xff]
    %v1215 = vld [vmem:[#allocation8 + $0xd8] sm:$0xff]
    %v1216 = vld [vmem:[#allocation8 + $0xe0] sm:$0xff]
    %v1217 = vld [vmem:[#allocation8 + $0xe8] sm:$0xff]
    %v1218 = vld [vmem:[#allocation8 + $0xf0] sm:$0xff]
    %v1219 = vld [vmem:[#allocation8 + $0xf8] sm:$0xff]
    %v1220 = vld [vmem:[#allocation10] sm:$0x3]
    %v1222 = vlaneseq
    %v1223 = vshrl.u32 %v1222, 7
    %v1224 = vsub.s32 0, %v1223
    %v1225 = vrot.slane %v1220, %v1224
    %v1226 = vlaneseq
    %v1227 = vshrl.u32 %v1226, 7
    %v1228 = vsub.s32 1, %v1227
    %v1229 = vrot.slane %v1220, %v1228
    %v1264 = vunpack.c.l.b16 %v1188
    %v1265 = vunpack.c.h.b16 %v1188
    %v1266 = vunpack.c.l.b16 %v1189
    %v1267 = vunpack.c.h.b16 %v1189
    %v1268 = vunpack.c.l.b16 %v1190
    %v1269 = vunpack.c.h.b16 %v1190
    %v1270 = vunpack.c.l.b16 %v1191
    %v1271 = vunpack.c.h.b16 %v1191
    %v1272 = vunpack.c.l.b16 %v1192
    %v1273 = vunpack.c.h.b16 %v1192
    %v1274 = vunpack.c.l.b16 %v1193
    %v1275 = vunpack.c.h.b16 %v1193
    %v1276 = vunpack.c.l.b16 %v1194
    %v1277 = vunpack.c.h.b16 %v1194
    %v1278 = vunpack.c.l.b16 %v1195
    %v1279 = vunpack.c.h.b16 %v1195
    %v1280 = vunpack.c.l.b16 %v1196
    %v1281 = vunpack.c.h.b16 %v1196
    %v1282 = vunpack.c.l.b16 %v1197
    %v1283 = vunpack.c.h.b16 %v1197
    %v1284 = vunpack.c.l.b16 %v1198
    %v1285 = vunpack.c.h.b16 %v1198
    %v1286 = vunpack.c.l.b16 %v1199
    %v1287 = vunpack.c.h.b16 %v1199
    %v1288 = vunpack.c.l.b16 %v1200
    %v1289 = vunpack.c.h.b16 %v1200
    %v1290 = vunpack.c.l.b16 %v1201
    %v1291 = vunpack.c.h.b16 %v1201
    %v1292 = vunpack.c.l.b16 %v1202
    %v1293 = vunpack.c.h.b16 %v1202
    %v1294 = vunpack.c.l.b16 %v1203
    %v1295 = vunpack.c.h.b16 %v1203
    %v1296 = vunpack.c.l.b16 %v1204
    %v1297 = vunpack.c.h.b16 %v1204
    %v1298 = vunpack.c.l.b16 %v1205
    %v1299 = vunpack.c.h.b16 %v1205
    %v1300 = vunpack.c.l.b16 %v1206
    %v1301 = vunpack.c.h.b16 %v1206
    %v1302 = vunpack.c.l.b16 %v1207
    %v1303 = vunpack.c.h.b16 %v1207
    %v1304 = vunpack.c.l.b16 %v1208
    %v1305 = vunpack.c.h.b16 %v1208
    %v1306 = vunpack.c.l.b16 %v1209
    %v1307 = vunpack.c.h.b16 %v1209
    %v1308 = vunpack.c.l.b16 %v1210
    %v1309 = vunpack.c.h.b16 %v1210
    %v1310 = vunpack.c.l.b16 %v1211
    %v1311 = vunpack.c.h.b16 %v1211
    %v1312 = vunpack.c.l.b16 %v1212
    %v1313 = vunpack.c.h.b16 %v1212
    %v1314 = vunpack.c.l.b16 %v1213
    %v1315 = vunpack.c.h.b16 %v1213
    %v1316 = vunpack.c.l.b16 %v1214
    %v1317 = vunpack.c.h.b16 %v1214
    %v1318 = vunpack.c.l.b16 %v1215
    %v1319 = vunpack.c.h.b16 %v1215
    %v1320 = vunpack.c.l.b16 %v1216
    %v1321 = vunpack.c.h.b16 %v1216
    %v1322 = vunpack.c.l.b16 %v1217
    %v1323 = vunpack.c.h.b16 %v1217
    %v1324 = vunpack.c.l.b16 %v1218
    %v1325 = vunpack.c.h.b16 %v1218
    %v1326 = vunpack.c.l.b16 %v1219
    %v1327 = vunpack.c.h.b16 %v1219
    %v1328 = vpack.c.b16 %v1266, %v1264
    %v1329 = vpack.c.b16 %v1267, %v1265
    %v1330 = vpack.c.b16 %v1270, %v1268
    %v1331 = vpack.c.b16 %v1271, %v1269
    %v1332 = vpack.c.b16 %v1274, %v1272
    %v1333 = vpack.c.b16 %v1275, %v1273
    %v1334 = vpack.c.b16 %v1278, %v1276
    %v1335 = vpack.c.b16 %v1279, %v1277
    %v1336 = vpack.c.b16 %v1282, %v1280
    %v1337 = vpack.c.b16 %v1283, %v1281
    %v1338 = vpack.c.b16 %v1286, %v1284
    %v1339 = vpack.c.b16 %v1287, %v1285
    %v1340 = vpack.c.b16 %v1290, %v1288
    %v1341 = vpack.c.b16 %v1291, %v1289
    %v1342 = vpack.c.b16 %v1294, %v1292
    %v1343 = vpack.c.b16 %v1295, %v1293
    %v1344 = vpack.c.b16 %v1298, %v1296
    %v1345 = vpack.c.b16 %v1299, %v1297
    %v1346 = vpack.c.b16 %v1302, %v1300
    %v1347 = vpack.c.b16 %v1303, %v1301
    %v1348 = vpack.c.b16 %v1306, %v1304
    %v1349 = vpack.c.b16 %v1307, %v1305
    %v1350 = vpack.c.b16 %v1310, %v1308
    %v1351 = vpack.c.b16 %v1311, %v1309
    %v1352 = vpack.c.b16 %v1314, %v1312
    %v1353 = vpack.c.b16 %v1315, %v1313
    %v1354 = vpack.c.b16 %v1318, %v1316
    %v1355 = vpack.c.b16 %v1319, %v1317
    %v1356 = vpack.c.b16 %v1322, %v1320
    %v1357 = vpack.c.b16 %v1323, %v1321
    %v1358 = vpack.c.b16 %v1326, %v1324
    %v1359 = vpack.c.b16 %v1327, %v1325
    %1392 = vmatprep.subr.bf16.mxu0 %v1343
    %1393 = vmatpush1.bf16.msra.mxu0 %v1342
    %1394 = vmatprep.subr.bf16.mxu0 %v1341
    %1395 = vmatpush1.bf16.msra.mxu0 %v1340
    %1396 = vmatprep.subr.bf16.mxu0 %v1339
    %1397 = vmatpush1.bf16.msra.mxu0 %v1338
    %1398 = vmatprep.subr.bf16.mxu0 %v1337
    %1399 = vmatpush1.bf16.msra.mxu0 %v1336
    %1400 = vmatprep.subr.bf16.mxu0 %v1335
    %1401 = vmatpush1.bf16.msra.mxu0 %v1334
    %1402 = vmatprep.subr.bf16.mxu0 %v1333
    %1403 = vmatpush1.bf16.msra.mxu0 %v1332
    %1404 = vmatprep.subr.bf16.mxu0 %v1331
    %1405 = vmatpush1.bf16.msra.mxu0 %v1330
    %1406 = vmatprep.subr.bf16.mxu0 %v1329
    %1407 = vmatpush1.bf16.msra.mxu0 %v1328
    %1408 = vmatprep.subr.bf16.mxu0 %v1359
    %1409 = vmatpush2.bf16.msra.mxu0 %v1358
    %1410 = vmatprep.subr.bf16.mxu0 %v1357
    %1411 = vmatpush2.bf16.msra.mxu0 %v1356
    %1412 = vmatprep.subr.bf16.mxu0 %v1355
    %1413 = vmatpush2.bf16.msra.mxu0 %v1354
    %1414 = vmatprep.subr.bf16.mxu0 %v1353
    %1415 = vmatpush2.bf16.msra.mxu0 %v1352
    %1416 = vmatprep.subr.bf16.mxu0 %v1351
    %1417 = vmatpush2.bf16.msra.mxu0 %v1350
    %1418 = vmatprep.subr.bf16.mxu0 %v1349
    %1419 = vmatpush2.bf16.msra.mxu0 %v1348
    %1420 = vmatprep.subr.bf16.mxu0 %v1347
    %1421 = vmatpush2.bf16.msra.mxu0 %v1346
    %1422 = vmatprep.subr.bf16.mxu0 %v1345
    %1423 = vmatpush2.bf16.msra.mxu0 %v1344
    %1424 = vmatprep.mubr.bf16.mxu0 %v1187
    %1425 = vmatmul.mubr.bf16.gmra.mxu0 %v1186
    %v1426 = vpop.f32.mrf.mxu0
    %v1427 = vadd.f32 %v1225, %v1426
    %v1428 = vpop.f32.mrf.mxu0
    %v1429 = vadd.f32 %v1229, %v1428
    %v1430 = vpop.f32.mrf.mxu0
    %v1431 = vadd.f32 %v1225, %v1430
    %v1432 = vpop.f32.mrf.mxu0
    %v1433 = vadd.f32 %v1229, %v1432
    %1434 = vdwg.mxu0
    %1435 = vst [vmem:[#allocation11] sm:$0xff] %v1427
    %1436 = vst [vmem:[#allocation11 + $0x8] sm:$0xff] %v1429
    %1437 = vst [vmem:[#allocation11 + $0x10] sm:$0xff] %v1431
    %1438 = vst [vmem:[#allocation11 + $0x18] sm:$0xff] %v1433
    %1439 = vst [vmem:[%s15] sm:$0xff] %v799
    %1440 = vst [vmem:[%s15 + $0x8] sm:$0xff] %v802
    // Predicated region
    $region78: #{vae_forward.1} parent=1 // pred_check
      _
    $region79: #{vae_forward.1} parent=1 // pred_check_branch
      %1442 = sbr.rel (0) target = $region81
    $region80: #{vae_forward.1} parent=1 // pred_region
      %s1444 = ssub.s32 512, 512
      %1445 = vsyncadd [#allocation4], %s1444
      %s1446 = sshll.u32 [#allocation11], 4
      %s1447 = int_to_ptr.vmem [resolvable:$true] %s1446
      %1452 = dma.vmem_to_hbm [thread:$0]  %s1447, 512, %s14, [#allocation4], 256, 256, 16
    $region81: #{vae_forward.1} parent=1 // pred_fallthru
      _
    // Predicated region
    $region82: #{vae_forward.1} parent=1 // pred_check
      _
    $region83: #{vae_forward.1} parent=1 // pred_check_branch
      %1454 = sbr.rel (0) target = $region85
    $region84: #{vae_forward.1} parent=1 // pred_region
      _
    $region85: #{vae_forward.1} parent=1 // pred_fallthru
      _
    // Predicated region
    $region86: #{vae_forward.1} parent=1 // pred_check
      _
    $region87: #{vae_forward.1} parent=1 // pred_check_branch
      %1456 = sbr.rel (0) target = $region89
    $region88: #{vae_forward.1} parent=1 // pred_region
      %1457 = dma.done [#allocation4], 512
    $region89: #{vae_forward.1} parent=1 // pred_fallthru
      _
    // Predicated region
    $region90: #{vae_forward.1} parent=1 // pred_check
      _
    $region91: #{vae_forward.1} parent=1 // pred_check_branch
      %1459 = sbr.rel (0) target = $region93
    $region92: #{vae_forward.1} parent=1 // pred_region
      _
    $region93: #{vae_forward.1} parent=1 // pred_fallthru
      _
    %1460 = vsyncpa [#allocation3], 1
    %1461 = vsyncpa [#allocation6], 1
    %1462 = vsyncpa [#allocation9], 1
    %1463 = vsyncpa [#allocation4], 1

</llo_original>
